<compile_context>
chip_gen: v6e
topology: v6e:2x2x1
jax: 0.10.0
libtpu: 0.0.40
codegen_flags: <defaults>
</compile_context>

<pallas_src>
import jax
import jax.numpy as jnp
from jax.experimental import pallas as pl
from jax.experimental.pallas import tpu as pltpu


# ----------------------------- Pallas kernel ------------------------------- #
def grn_decoder_kernel(
    x0_ref,      # [bm, N]            initial decoder input (feature dim squeezed)
    xw_ref,      # [N, N*Hgcn]  bf16  A_norm^T @ E (graph prop + node->flat expansion)
    gcn_wb_ref,  # [2, N*Hgcn]  f32   row 0: tiled GCN weight, row 1: tiled GCN bias
    wbig_ref,    # [N*Hgcn+Hg, 4*Hg] bf16  fused gate weights (r | z | n_x | n_h)
    bbig_ref,    # [1, 4*Hg]    f32   [b_ir+b_hr | b_iz+b_hz | b_in | b_hn]
    wfc_ref,     # [Hg, N]      bf16  fc weight^T
    bfc_ref,     # [1, N]       f32   fc bias
    h0_ref,      # [bm, Hg]           initial GRU hidden
    out_ref,     # [T, bm, N]         all forecast steps (step-major)
):
    f32 = jnp.float32
    Hg = h0_ref.shape[1]
    T = out_ref.shape[0]
    Bb = x0_ref.shape[0]
    NHg = xw_ref.shape[1]
    N = out_ref.shape[2]

    x = x0_ref[...].astype(f32)                 # [Bb, N]
    h = h0_ref[...].astype(f32)                 # [Bb, Hg]

    # Weights: bf16 in VMEM (halved DMA), up-cast once per invocation; compute in f32.
    xw = xw_ref[...].astype(f32)                # [N, N*Hgcn]
    wbig = wbig_ref[...].astype(f32)            # [N*Hgcn+Hg, 4Hg]
    wfc = wfc_ref[...].astype(f32)              # [Hg, N]

    # Hoist [1,K]->[Bb,K] broadcasts out of the recurrence (no CSE for broadcasts).
    wg = jnp.broadcast_to(gcn_wb_ref[0:1, :], (Bb, NHg))
    bg = jnp.broadcast_to(gcn_wb_ref[1:2, :], (Bb, NHg))
    bbig = jnp.broadcast_to(bbig_ref[...], (Bb, 4 * Hg))
    bfc = jnp.broadcast_to(bfc_ref[...], (Bb, N))

    # Sequential recurrence; T is small and static -> unrolled.
    # TODO(synk): switch to lax.fori_loop (dynamic out_ref[t] store) if T grows large.
    for t in range(T):
        # --- GCN + ReLU, already flattened to match .view(B, -1) ---
        ax_exp = jnp.dot(x, xw, preferred_element_type=f32)            # [Bb, N*Hgcn]
        emb = jax.nn.relu(ax_exp * wg + bg)                            # [Bb, N*Hgcn]

        # --- single fused GRU gate matmul: [emb | h] @ W_big ---
        cat = jnp.concatenate([emb, h], axis=-1)                       # [Bb, N*Hgcn+Hg]
        g = jnp.dot(cat, wbig, preferred_element_type=f32) + bbig      # [Bb, 4Hg]

        # --- GRUCell gate math (PyTorch order r, z, n) ---
        r = jax.nn.sigmoid(g[:, 0 * Hg:1 * Hg])
        z = jax.nn.sigmoid(g[:, 1 * Hg:2 * Hg])
        n = jnp.tanh(g[:, 2 * Hg:3 * Hg] + r * g[:, 3 * Hg:4 * Hg])
        h = (1.0 - z) * n + z * h                                      # [Bb, Hg]

        # --- fc + autoregressive feedback ---
        out = jnp.dot(h, wfc, preferred_element_type=f32) + bfc        # [Bb, N]
        out_ref[t] = out.astype(out_ref.dtype)   # dense [Bb, N] slab, static index
        x = out


# ------------------------------ JAX wrapper -------------------------------- #
def grn_decoder_forward(decoder_input, hidden, kparams, forecast_steps, *, batch_block=8):
    """decoder_input: [B, N, 1], hidden: [B, Hg]. Returns [B, T, N]."""
    B, N, _ = decoder_input.shape
    Hg = hidden.shape[1]
    f32 = jnp.float32
    x0 = decoder_input[..., 0].astype(f32)               # [B, N]
    h0 = hidden.astype(f32)                               # [B, Hg]

    # One batch block per grid step; "parallel" axis lets v7x split blocks across TCs.
    bm = batch_block if (B % batch_block == 0) else B
    grid = (B // bm,)

    def wspec(a):  # full-array weight block, same for every grid point (no re-fetch)
        return pl.BlockSpec(a.shape, lambda i: (0, 0))

    out_tbn = pl.pallas_call(
        grn_decoder_kernel,
        out_shape=jax.ShapeDtypeStruct((forecast_steps, B, N), f32),
        grid=grid,
        in_specs=[
            pl.BlockSpec((bm, N), lambda i: (i, 0)),      # x0
            wspec(kparams["xw"]),
            wspec(kparams["gcn_wb"]),
            wspec(kparams["w_big"]),
            wspec(kparams["b_big"]),
            wspec(kparams["wfc"]),
            wspec(kparams["bfc"]),
            pl.BlockSpec((bm, Hg), lambda i: (i, 0)),     # h0
        ],
        out_specs=pl.BlockSpec((forecast_steps, bm, N), lambda i: (0, i, 0)),
        compiler_params=pltpu.CompilerParams(
            dimension_semantics=("parallel",),
            vmem_limit_bytes=32 * 1024 * 1024,
        ),
    )(
        x0,
        kparams["xw"], kparams["gcn_wb"],
        kparams["w_big"], kparams["b_big"],
        kparams["wfc"], kparams["bfc"],
        h0,
    )
    return jnp.transpose(out_tbn, (1, 0, 2))               # [B, T, N]


# --------------------------- glue / param setup ----------------------------- #
def build_gcn_norm(edge_index, num_nodes):
    """Dense D^-1/2 (A + I) D^-1/2 matching PyG gcn_norm with unit edge weights."""
    src, dst = edge_index
    a = jnp.zeros((num_nodes, num_nodes), jnp.float32).at[dst, src].add(1.0)
    a = a + jnp.eye(num_nodes, dtype=jnp.float32)
    deg = a.sum(axis=1)
    dinv = jnp.where(deg > 0, 1.0 / jnp.sqrt(deg), 0.0)
    return dinv[:, None] * a * dinv[None, :]


def init_params(key, num_nodes, gcn_hidden, gru_hidden, decoder_input_dim=1):
    keys = jax.random.split(key, 8)
    s = 0.1
    w_gcn = s * jax.random.normal(keys[0], (gcn_hidden, decoder_input_dim), jnp.float32)
    b_gcn = s * jax.random.normal(keys[1], (gcn_hidden,), jnp.float32)
    w_ih = s * jax.random.normal(keys[2], (3 * gru_hidden, num_nodes * gcn_hidden), jnp.float32)
    w_hh = s * jax.random.normal(keys[3], (3 * gru_hidden, gru_hidden), jnp.float32)
    b_ih = s * jax.random.normal(keys[4], (3 * gru_hidden,), jnp.float32)
    b_hh = s * jax.random.normal(keys[5], (3 * gru_hidden,), jnp.float32)
    w_fc = s * jax.random.normal(keys[6], (num_nodes, gru_hidden), jnp.float32)
    b_fc = s * jax.random.normal(keys[7], (num_nodes,), jnp.float32)
    return dict(w_gcn=w_gcn, b_gcn=b_gcn, w_ih=w_ih, w_hh=w_hh,
                b_ih=b_ih, b_hh=b_hh, w_fc=w_fc, b_fc=b_fc)


def pack_kernel_params(raw, a_norm, num_nodes, gcn_hidden, gru_hidden):
    """Precompute kernel-friendly fused operands (weight matrices stored bf16)."""
    f32, bf16 = jnp.float32, jnp.bfloat16
    N, Hgcn, Hg = num_nodes, gcn_hidden, gru_hidden
    NHg = N * Hgcn

    # Node -> flat expansion fused with graph propagation: xw[m, n*Hgcn+k] = A_norm[n, m].
    expand = jnp.repeat(jnp.eye(N, dtype=f32), Hgcn, axis=1)            # [N, N*Hgcn]
    xw = (a_norm.T.astype(f32) @ expand).astype(bf16)                   # [N, N*Hgcn] bf16

    wg_flat = jnp.tile(raw["w_gcn"].T.astype(f32), (1, N))              # [1, N*Hgcn]
    bg_flat = jnp.tile(raw["b_gcn"][None, :].astype(f32), (1, N))       # [1, N*Hgcn]
    gcn_wb = jnp.concatenate([wg_flat, bg_flat], axis=0)                # [2, N*Hgcn] f32

    # Fused 4-gate block weight: rows = [emb_flat | h], columns = [r | z | n_x | n_h].
    w_ih_t = raw["w_ih"].astype(f32).T                                  # [N*Hgcn, 3Hg]
    w_hh_t = raw["w_hh"].astype(f32).T                                  # [Hg, 3Hg]
    top = jnp.concatenate([w_ih_t, jnp.zeros((NHg, Hg), f32)], axis=1)  # [NHg, 4Hg]
    bot = jnp.concatenate([w_hh_t[:, :2 * Hg], jnp.zeros((Hg, Hg), f32),
                           w_hh_t[:, 2 * Hg:]], axis=1)                 # [Hg, 4Hg]
    w_big = jnp.concatenate([top, bot], axis=0).astype(bf16)            # [NHg+Hg, 4Hg] bf16

    b_ih, b_hh = raw["b_ih"].astype(f32), raw["b_hh"].astype(f32)
    b_big = jnp.concatenate([b_ih[:2 * Hg] + b_hh[:2 * Hg],
                             b_ih[2 * Hg:], b_hh[2 * Hg:]])[None, :]    # [1, 4Hg] f32

    return dict(
        xw=xw,                                       # [N, N*Hgcn]     bf16
        gcn_wb=gcn_wb,                               # [2, N*Hgcn]     f32
        w_big=w_big,                                 # [N*Hgcn+Hg,4Hg] bf16
        b_big=b_big,                                 # [1, 4Hg]        f32
        wfc=raw["w_fc"].astype(f32).T.astype(bf16),  # [Hg, N]         bf16
        bfc=raw["b_fc"][None, :].astype(f32),        # [1, N]          f32
    )


def reference_forward(decoder_input, hidden, a_norm, raw, forecast_steps):
    """Pure-JAX replica of the PyTorch forward (targets=None), for verification."""
    B, N, _ = decoder_input.shape
    Hg = hidden.shape[1]
    x = decoder_input
    h = hidden
    outs = []
    for _ in range(forecast_steps):
        lin = x @ raw["w_gcn"].T                      # [B, N, Hgcn]
        emb = jax.nn.relu(jnp.einsum("ij,bjh->bih", a_norm, lin) + raw["b_gcn"])
        flat = emb.reshape(B, -1)
        gx = flat @ raw["w_ih"].T + raw["b_ih"]
        gh = h @ raw["w_hh"].T + raw["b_hh"]
        r = jax.nn.sigmoid(gx[:, :Hg] + gh[:, :Hg])
        z = jax.nn.sigmoid(gx[:, Hg:2 * Hg] + gh[:, Hg:2 * Hg])
        n = jnp.tanh(gx[:, 2 * Hg:] + r * gh[:, 2 * Hg:])
        h = (1.0 - z) * n + z * h
        out = h @ raw["w_fc"].T + raw["b_fc"]         # [B, N]
        outs.append(out[:, None, :])
        x = out[..., None]
    return jnp.concatenate(outs, axis=1)              # [B, T, N]


# ---------------------------------- main ------------------------------------ #
if __name__ == "__main__":
    B, N = 2, 8
    GCN_HIDDEN, GRU_HIDDEN = 16, 32
    FORECAST_STEPS = 4
    DECODER_INPUT_DIM = 1

    key = jax.random.PRNGKey(0)
    k_in, k_h, k_p, k_in2, k_h2 = jax.random.split(key, 5)

    decoder_input = jax.random.normal(k_in, (B, N, DECODER_INPUT_DIM), jnp.float32)
    hidden = jax.random.normal(k_h, (B, GRU_HIDDEN), jnp.float32)

    # simple undirected ring graph
    src = jnp.arange(N, dtype=jnp.int32)
    dst = (src + 1) % N
    edge_index = jnp.stack([jnp.concatenate([src, dst]),
                            jnp.concatenate([dst, src])], axis=0)   # [2, 2N]
    a_norm = build_gcn_norm(edge_index, N)

    raw = init_params(k_p, N, GCN_HIDDEN, GRU_HIDDEN, DECODER_INPUT_DIM)

    # Round-trip matmul weights through bf16 so the kernel (bf16 storage) and the
    # f32 reference evaluate the exact same weight values.
    bf = lambda a: a.astype(jnp.bfloat16).astype(jnp.float32)
    raw_q = dict(raw, w_ih=bf(raw["w_ih"]), w_hh=bf(raw["w_hh"]), w_fc=bf(raw["w_fc"]))
    a_norm_q = bf(a_norm)

    kparams = pack_kernel_params(raw_q, a_norm_q, N, GCN_HIDDEN, GRU_HIDDEN)

    # --- check 1: module-sized batch (single grid block) ---
    out = grn_decoder_forward(decoder_input, hidden, kparams, FORECAST_STEPS)
    out = jax.block_until_ready(out)
    ref = reference_forward(decoder_input, hidden, a_norm_q, raw_q, FORECAST_STEPS)
    assert out.shape == (B, FORECAST_STEPS, N)
    assert jnp.allclose(out, ref, atol=2e-3, rtol=2e-3), "mismatch vs reference (B=2)"

    # --- check 2: larger batch exercises the batch-parallel grid path (v7x megacore) ---
    B2 = 16
    decoder_input2 = jax.random.normal(k_in2, (B2, N, DECODER_INPUT_DIM), jnp.float32)
    hidden2 = jax.random.normal(k_h2, (B2, GRU_HIDDEN), jnp.float32)
    out2 = jax.block_until_ready(
        grn_decoder_forward(decoder_input2, hidden2, kparams, FORECAST_STEPS))
    ref2 = reference_forward(decoder_input2, hidden2, a_norm_q, raw_q, FORECAST_STEPS)
    assert out2.shape == (B2, FORECAST_STEPS, N)
    assert jnp.allclose(out2, ref2, atol=2e-3, rtol=2e-3), "mismatch vs reference (B=16)"

    print("KERNEL_OK")
</pallas_src>

<mosaic_0001>
module attributes {stable_mosaic.version = 11 : i64} {
  func.func @grn_decoder_kernel(%arg0: i32, %arg1: memref<2x8xf32, #tpu.memory_space<vmem>>, %arg2: memref<8x128xbf16, #tpu.memory_space<vmem>>, %arg3: memref<2x128xf32, #tpu.memory_space<vmem>>, %arg4: memref<160x128xbf16, #tpu.memory_space<vmem>>, %arg5: memref<1x128xf32, #tpu.memory_space<vmem>>, %arg6: memref<32x8xbf16, #tpu.memory_space<vmem>>, %arg7: memref<1x8xf32, #tpu.memory_space<vmem>>, %arg8: memref<2x32xf32, #tpu.memory_space<vmem>>, %arg9: memref<4x2x8xf32, #tpu.memory_space<vmem>>) attributes {dimension_semantics = [#tpu.dimension_semantics<parallel>], iteration_bounds = array<i64: 1>, scalar_prefetch = 0 : i64, scratch_operands = 0 : i64, tpu.core_type = #tpu.core_type<tc>, window_params = [{transform_indices = @transform_0, window_bounds = array<i64: 2, 8>}, {pipeline_mode = #tpu.pipeline_mode<synchronous>, transform_indices = @transform_1, window_bounds = array<i64: 8, 128>}, {pipeline_mode = #tpu.pipeline_mode<synchronous>, transform_indices = @transform_2, window_bounds = array<i64: 2, 128>}, {pipeline_mode = #tpu.pipeline_mode<synchronous>, transform_indices = @transform_3, window_bounds = array<i64: 160, 128>}, {pipeline_mode = #tpu.pipeline_mode<synchronous>, transform_indices = @transform_4, window_bounds = array<i64: 1, 128>}, {pipeline_mode = #tpu.pipeline_mode<synchronous>, transform_indices = @transform_5, window_bounds = array<i64: 32, 8>}, {pipeline_mode = #tpu.pipeline_mode<synchronous>, transform_indices = @transform_6, window_bounds = array<i64: 1, 8>}, {transform_indices = @transform_7, window_bounds = array<i64: 2, 32>}, {transform_indices = @transform_8, window_bounds = array<i64: 4, 2, 8>}]} {
    %c0 = arith.constant 0 : index
    %c0_0 = arith.constant 0 : index
    %0 = vector.load %arg1[%c0, %c0_0] : memref<2x8xf32, #tpu.memory_space<vmem>>, vector<2x8xf32>
    %c0_1 = arith.constant 0 : index
    %c0_2 = arith.constant 0 : index
    %1 = vector.load %arg8[%c0_1, %c0_2] : memref<2x32xf32, #tpu.memory_space<vmem>>, vector<2x32xf32>
    %c0_3 = arith.constant 0 : index
    %c0_4 = arith.constant 0 : index
    %2 = vector.load %arg2[%c0_3, %c0_4] : memref<8x128xbf16, #tpu.memory_space<vmem>>, vector<8x128xbf16>
    %3 = arith.extf %2 : vector<8x128xbf16> to vector<8x128xf32>
    %c0_5 = arith.constant 0 : index
    %c0_6 = arith.constant 0 : index
    %4 = vector.load %arg4[%c0_5, %c0_6] : memref<160x128xbf16, #tpu.memory_space<vmem>>, vector<160x128xbf16>
    %5 = arith.extf %4 : vector<160x128xbf16> to vector<160x128xf32>
    %c0_7 = arith.constant 0 : index
    %c0_8 = arith.constant 0 : index
    %6 = vector.load %arg6[%c0_7, %c0_8] : memref<32x8xbf16, #tpu.memory_space<vmem>>, vector<32x8xbf16>
    %7 = arith.extf %6 : vector<32x8xbf16> to vector<32x8xf32>
    %c0_9 = arith.constant 0 : index
    %c0_10 = arith.constant 0 : index
    %8 = vector.load %arg3[%c0_9, %c0_10] : memref<2x128xf32, #tpu.memory_space<vmem>>, vector<1x128xf32>
    %9 = vector.shape_cast %8 : vector<1x128xf32> to vector<1x128xf32>
    %10 = vector.broadcast %9 : vector<1x128xf32> to vector<2x128xf32>
    %c1 = arith.constant 1 : index
    %c0_11 = arith.constant 0 : index
    %11 = vector.load %arg3[%c1, %c0_11] : memref<2x128xf32, #tpu.memory_space<vmem>>, vector<1x128xf32>
    %12 = vector.shape_cast %11 : vector<1x128xf32> to vector<1x128xf32>
    %13 = vector.broadcast %12 : vector<1x128xf32> to vector<2x128xf32>
    %c0_12 = arith.constant 0 : index
    %c0_13 = arith.constant 0 : index
    %14 = vector.load %arg5[%c0_12, %c0_13] : memref<1x128xf32, #tpu.memory_space<vmem>>, vector<1x128xf32>
    %15 = vector.shape_cast %14 : vector<1x128xf32> to vector<1x128xf32>
    %16 = vector.broadcast %15 : vector<1x128xf32> to vector<2x128xf32>
    %c0_14 = arith.constant 0 : index
    %c0_15 = arith.constant 0 : index
    %17 = vector.load %arg7[%c0_14, %c0_15] : memref<1x8xf32, #tpu.memory_space<vmem>>, vector<1x8xf32>
    %18 = vector.shape_cast %17 : vector<1x8xf32> to vector<1x8xf32>
    %19 = vector.broadcast %18 : vector<1x8xf32> to vector<2x8xf32>
    %cst = arith.constant dense<0.000000e+00> : vector<2x128xf32>
    %20 = tpu.matmul %0, %3, %cst {dimension_numbers = #tpu.dot_dimension_numbers<[1], [0], [0], [1], [0, 0, 1, 1], [], []>} : vector<2x8xf32>, vector<8x128xf32>, vector<2x128xf32> -> vector<2x128xf32>
    %21 = arith.mulf %20, %10 : vector<2x128xf32>
    %22 = arith.addf %21, %13 : vector<2x128xf32>
    %cst_16 = arith.constant 0.000000e+00 : f32
    %23 = vector.broadcast %cst_16 : f32 to vector<2x128xf32>
    %24 = arith.maximumf %22, %23 : vector<2x128xf32>
    %25 = tpu.concatenate %24, %1 in 1 : vector<2x128xf32>, vector<2x32xf32> -> vector<2x160xf32>
    %cst_17 = arith.constant dense<0.000000e+00> : vector<2x128xf32>
    %26 = tpu.matmul %25, %5, %cst_17 {dimension_numbers = #tpu.dot_dimension_numbers<[1], [0], [0], [1], [0, 0, 1, 1], [], []>} : vector<2x160xf32>, vector<160x128xf32>, vector<2x128xf32> -> vector<2x128xf32>
    %27 = arith.addf %26, %16 : vector<2x128xf32>
    %28 = vector.extract_strided_slice %27 {offsets = [0, 0], sizes = [2, 32], strides = [1, 1]} : vector<2x128xf32> to vector<2x32xf32>
    %29 = arith.negf %28 : vector<2x32xf32>
    %30 = math.exp %29 : vector<2x32xf32>
    %cst_18 = arith.constant 1.000000e+00 : f32
    %31 = vector.broadcast %cst_18 : f32 to vector<2x32xf32>
    %32 = arith.addf %31, %30 : vector<2x32xf32>
    %33 = arith.divf %31, %32 : vector<2x32xf32>
    %34 = vector.extract_strided_slice %27 {offsets = [0, 32], sizes = [2, 32], strides = [1, 1]} : vector<2x128xf32> to vector<2x32xf32>
    %35 = arith.negf %34 : vector<2x32xf32>
    %36 = math.exp %35 : vector<2x32xf32>
    %cst_19 = arith.constant 1.000000e+00 : f32
    %37 = vector.broadcast %cst_19 : f32 to vector<2x32xf32>
    %38 = arith.addf %37, %36 : vector<2x32xf32>
    %39 = arith.divf %37, %38 : vector<2x32xf32>
    %40 = vector.extract_strided_slice %27 {offsets = [0, 64], sizes = [2, 32], strides = [1, 1]} : vector<2x128xf32> to vector<2x32xf32>
    %41 = vector.extract_strided_slice %27 {offsets = [0, 96], sizes = [2, 32], strides = [1, 1]} : vector<2x128xf32> to vector<2x32xf32>
    %42 = arith.mulf %33, %41 : vector<2x32xf32>
    %43 = arith.addf %40, %42 : vector<2x32xf32>
    %44 = math.tanh %43 : vector<2x32xf32>
    %cst_20 = arith.constant 1.000000e+00 : f32
    %45 = vector.broadcast %cst_20 : f32 to vector<2x32xf32>
    %46 = arith.subf %45, %39 : vector<2x32xf32>
    %47 = arith.mulf %46, %44 : vector<2x32xf32>
    %48 = arith.mulf %39, %1 : vector<2x32xf32>
    %49 = arith.addf %47, %48 : vector<2x32xf32>
    %cst_21 = arith.constant dense<0.000000e+00> : vector<2x8xf32>
    %50 = tpu.matmul %49, %7, %cst_21 {dimension_numbers = #tpu.dot_dimension_numbers<[1], [0], [0], [1], [0, 0, 1, 1], [], []>} : vector<2x32xf32>, vector<32x8xf32>, vector<2x8xf32> -> vector<2x8xf32>
    %51 = arith.addf %50, %19 : vector<2x8xf32>
    %c0_22 = arith.constant 0 : index
    %c0_23 = arith.constant 0 : index
    %c0_24 = arith.constant 0 : index
    %52 = vector.load %arg9[%c0_22, %c0_23, %c0_24] : memref<4x2x8xf32, #tpu.memory_space<vmem>>, vector<1x2x8xf32>
    %53 = vector.shape_cast %52 : vector<1x2x8xf32> to vector<2x8xf32>
    %54 = vector.shape_cast %51 : vector<2x8xf32> to vector<1x2x8xf32>
    tpu.vector_store %arg9[%c0_22, %c0_23, %c0_24], %54 {strides = array<i32>} : memref<4x2x8xf32, #tpu.memory_space<vmem>>, vector<1x2x8xf32>,
    %cst_25 = arith.constant dense<0.000000e+00> : vector<2x128xf32>
    %55 = tpu.matmul %51, %3, %cst_25 {dimension_numbers = #tpu.dot_dimension_numbers<[1], [0], [0], [1], [0, 0, 1, 1], [], []>} : vector<2x8xf32>, vector<8x128xf32>, vector<2x128xf32> -> vector<2x128xf32>
    %56 = arith.mulf %55, %10 : vector<2x128xf32>
    %57 = arith.addf %56, %13 : vector<2x128xf32>
    %cst_26 = arith.constant 0.000000e+00 : f32
    %58 = vector.broadcast %cst_26 : f32 to vector<2x128xf32>
    %59 = arith.maximumf %57, %58 : vector<2x128xf32>
    %60 = tpu.concatenate %59, %49 in 1 : vector<2x128xf32>, vector<2x32xf32> -> vector<2x160xf32>
    %cst_27 = arith.constant dense<0.000000e+00> : vector<2x128xf32>
    %61 = tpu.matmul %60, %5, %cst_27 {dimension_numbers = #tpu.dot_dimension_numbers<[1], [0], [0], [1], [0, 0, 1, 1], [], []>} : vector<2x160xf32>, vector<160x128xf32>, vector<2x128xf32> -> vector<2x128xf32>
    %62 = arith.addf %61, %16 : vector<2x128xf32>
    %63 = vector.extract_strided_slice %62 {offsets = [0, 0], sizes = [2, 32], strides = [1, 1]} : vector<2x128xf32> to vector<2x32xf32>
    %64 = arith.negf %63 : vector<2x32xf32>
    %65 = math.exp %64 : vector<2x32xf32>
    %cst_28 = arith.constant 1.000000e+00 : f32
    %66 = vector.broadcast %cst_28 : f32 to vector<2x32xf32>
    %67 = arith.addf %66, %65 : vector<2x32xf32>
    %68 = arith.divf %66, %67 : vector<2x32xf32>
    %69 = vector.extract_strided_slice %62 {offsets = [0, 32], sizes = [2, 32], strides = [1, 1]} : vector<2x128xf32> to vector<2x32xf32>
    %70 = arith.negf %69 : vector<2x32xf32>
    %71 = math.exp %70 : vector<2x32xf32>
    %cst_29 = arith.constant 1.000000e+00 : f32
    %72 = vector.broadcast %cst_29 : f32 to vector<2x32xf32>
    %73 = arith.addf %72, %71 : vector<2x32xf32>
    %74 = arith.divf %72, %73 : vector<2x32xf32>
    %75 = vector.extract_strided_slice %62 {offsets = [0, 64], sizes = [2, 32], strides = [1, 1]} : vector<2x128xf32> to vector<2x32xf32>
    %76 = vector.extract_strided_slice %62 {offsets = [0, 96], sizes = [2, 32], strides = [1, 1]} : vector<2x128xf32> to vector<2x32xf32>
    %77 = arith.mulf %68, %76 : vector<2x32xf32>
    %78 = arith.addf %75, %77 : vector<2x32xf32>
    %79 = math.tanh %78 : vector<2x32xf32>
    %cst_30 = arith.constant 1.000000e+00 : f32
    %80 = vector.broadcast %cst_30 : f32 to vector<2x32xf32>
    %81 = arith.subf %80, %74 : vector<2x32xf32>
    %82 = arith.mulf %81, %79 : vector<2x32xf32>
    %83 = arith.mulf %74, %49 : vector<2x32xf32>
    %84 = arith.addf %82, %83 : vector<2x32xf32>
    %cst_31 = arith.constant dense<0.000000e+00> : vector<2x8xf32>
    %85 = tpu.matmul %84, %7, %cst_31 {dimension_numbers = #tpu.dot_dimension_numbers<[1], [0], [0], [1], [0, 0, 1, 1], [], []>} : vector<2x32xf32>, vector<32x8xf32>, vector<2x8xf32> -> vector<2x8xf32>
    %86 = arith.addf %85, %19 : vector<2x8xf32>
    %c1_32 = arith.constant 1 : index
    %c0_33 = arith.constant 0 : index
    %c0_34 = arith.constant 0 : index
    %87 = vector.load %arg9[%c1_32, %c0_33, %c0_34] : memref<4x2x8xf32, #tpu.memory_space<vmem>>, vector<1x2x8xf32>
    %88 = vector.shape_cast %87 : vector<1x2x8xf32> to vector<2x8xf32>
    %89 = vector.shape_cast %86 : vector<2x8xf32> to vector<1x2x8xf32>
    tpu.vector_store %arg9[%c1_32, %c0_33, %c0_34], %89 {strides = array<i32>} : memref<4x2x8xf32, #tpu.memory_space<vmem>>, vector<1x2x8xf32>,
    %cst_35 = arith.constant dense<0.000000e+00> : vector<2x128xf32>
    %90 = tpu.matmul %86, %3, %cst_35 {dimension_numbers = #tpu.dot_dimension_numbers<[1], [0], [0], [1], [0, 0, 1, 1], [], []>} : vector<2x8xf32>, vector<8x128xf32>, vector<2x128xf32> -> vector<2x128xf32>
    %91 = arith.mulf %90, %10 : vector<2x128xf32>
    %92 = arith.addf %91, %13 : vector<2x128xf32>
    %cst_36 = arith.constant 0.000000e+00 : f32
    %93 = vector.broadcast %cst_36 : f32 to vector<2x128xf32>
    %94 = arith.maximumf %92, %93 : vector<2x128xf32>
    %95 = tpu.concatenate %94, %84 in 1 : vector<2x128xf32>, vector<2x32xf32> -> vector<2x160xf32>
    %cst_37 = arith.constant dense<0.000000e+00> : vector<2x128xf32>
    %96 = tpu.matmul %95, %5, %cst_37 {dimension_numbers = #tpu.dot_dimension_numbers<[1], [0], [0], [1], [0, 0, 1, 1], [], []>} : vector<2x160xf32>, vector<160x128xf32>, vector<2x128xf32> -> vector<2x128xf32>
    %97 = arith.addf %96, %16 : vector<2x128xf32>
    %98 = vector.extract_strided_slice %97 {offsets = [0, 0], sizes = [2, 32], strides = [1, 1]} : vector<2x128xf32> to vector<2x32xf32>
    %99 = arith.negf %98 : vector<2x32xf32>
    %100 = math.exp %99 : vector<2x32xf32>
    %cst_38 = arith.constant 1.000000e+00 : f32
    %101 = vector.broadcast %cst_38 : f32 to vector<2x32xf32>
    %102 = arith.addf %101, %100 : vector<2x32xf32>
    %103 = arith.divf %101, %102 : vector<2x32xf32>
    %104 = vector.extract_strided_slice %97 {offsets = [0, 32], sizes = [2, 32], strides = [1, 1]} : vector<2x128xf32> to vector<2x32xf32>
    %105 = arith.negf %104 : vector<2x32xf32>
    %106 = math.exp %105 : vector<2x32xf32>
    %cst_39 = arith.constant 1.000000e+00 : f32
    %107 = vector.broadcast %cst_39 : f32 to vector<2x32xf32>
    %108 = arith.addf %107, %106 : vector<2x32xf32>
    %109 = arith.divf %107, %108 : vector<2x32xf32>
    %110 = vector.extract_strided_slice %97 {offsets = [0, 64], sizes = [2, 32], strides = [1, 1]} : vector<2x128xf32> to vector<2x32xf32>
    %111 = vector.extract_strided_slice %97 {offsets = [0, 96], sizes = [2, 32], strides = [1, 1]} : vector<2x128xf32> to vector<2x32xf32>
    %112 = arith.mulf %103, %111 : vector<2x32xf32>
    %113 = arith.addf %110, %112 : vector<2x32xf32>
    %114 = math.tanh %113 : vector<2x32xf32>
    %cst_40 = arith.constant 1.000000e+00 : f32
    %115 = vector.broadcast %cst_40 : f32 to vector<2x32xf32>
    %116 = arith.subf %115, %109 : vector<2x32xf32>
    %117 = arith.mulf %116, %114 : vector<2x32xf32>
    %118 = arith.mulf %109, %84 : vector<2x32xf32>
    %119 = arith.addf %117, %118 : vector<2x32xf32>
    %cst_41 = arith.constant dense<0.000000e+00> : vector<2x8xf32>
    %120 = tpu.matmul %119, %7, %cst_41 {dimension_numbers = #tpu.dot_dimension_numbers<[1], [0], [0], [1], [0, 0, 1, 1], [], []>} : vector<2x32xf32>, vector<32x8xf32>, vector<2x8xf32> -> vector<2x8xf32>
    %121 = arith.addf %120, %19 : vector<2x8xf32>
    %c2 = arith.constant 2 : index
    %c0_42 = arith.constant 0 : index
    %c0_43 = arith.constant 0 : index
    %122 = vector.load %arg9[%c2, %c0_42, %c0_43] : memref<4x2x8xf32, #tpu.memory_space<vmem>>, vector<1x2x8xf32>
    %123 = vector.shape_cast %122 : vector<1x2x8xf32> to vector<2x8xf32>
    %124 = vector.shape_cast %121 : vector<2x8xf32> to vector<1x2x8xf32>
    tpu.vector_store %arg9[%c2, %c0_42, %c0_43], %124 {strides = array<i32>} : memref<4x2x8xf32, #tpu.memory_space<vmem>>, vector<1x2x8xf32>,
    %cst_44 = arith.constant dense<0.000000e+00> : vector<2x128xf32>
    %125 = tpu.matmul %121, %3, %cst_44 {dimension_numbers = #tpu.dot_dimension_numbers<[1], [0], [0], [1], [0, 0, 1, 1], [], []>} : vector<2x8xf32>, vector<8x128xf32>, vector<2x128xf32> -> vector<2x128xf32>
    %126 = arith.mulf %125, %10 : vector<2x128xf32>
    %127 = arith.addf %126, %13 : vector<2x128xf32>
    %cst_45 = arith.constant 0.000000e+00 : f32
    %128 = vector.broadcast %cst_45 : f32 to vector<2x128xf32>
    %129 = arith.maximumf %127, %128 : vector<2x128xf32>
    %130 = tpu.concatenate %129, %119 in 1 : vector<2x128xf32>, vector<2x32xf32> -> vector<2x160xf32>
    %cst_46 = arith.constant dense<0.000000e+00> : vector<2x128xf32>
    %131 = tpu.matmul %130, %5, %cst_46 {dimension_numbers = #tpu.dot_dimension_numbers<[1], [0], [0], [1], [0, 0, 1, 1], [], []>} : vector<2x160xf32>, vector<160x128xf32>, vector<2x128xf32> -> vector<2x128xf32>
    %132 = arith.addf %131, %16 : vector<2x128xf32>
    %133 = vector.extract_strided_slice %132 {offsets = [0, 0], sizes = [2, 32], strides = [1, 1]} : vector<2x128xf32> to vector<2x32xf32>
    %134 = arith.negf %133 : vector<2x32xf32>
    %135 = math.exp %134 : vector<2x32xf32>
    %cst_47 = arith.constant 1.000000e+00 : f32
    %136 = vector.broadcast %cst_47 : f32 to vector<2x32xf32>
    %137 = arith.addf %136, %135 : vector<2x32xf32>
    %138 = arith.divf %136, %137 : vector<2x32xf32>
    %139 = vector.extract_strided_slice %132 {offsets = [0, 32], sizes = [2, 32], strides = [1, 1]} : vector<2x128xf32> to vector<2x32xf32>
    %140 = arith.negf %139 : vector<2x32xf32>
    %141 = math.exp %140 : vector<2x32xf32>
    %cst_48 = arith.constant 1.000000e+00 : f32
    %142 = vector.broadcast %cst_48 : f32 to vector<2x32xf32>
    %143 = arith.addf %142, %141 : vector<2x32xf32>
    %144 = arith.divf %142, %143 : vector<2x32xf32>
    %145 = vector.extract_strided_slice %132 {offsets = [0, 64], sizes = [2, 32], strides = [1, 1]} : vector<2x128xf32> to vector<2x32xf32>
    %146 = vector.extract_strided_slice %132 {offsets = [0, 96], sizes = [2, 32], strides = [1, 1]} : vector<2x128xf32> to vector<2x32xf32>
    %147 = arith.mulf %138, %146 : vector<2x32xf32>
    %148 = arith.addf %145, %147 : vector<2x32xf32>
    %149 = math.tanh %148 : vector<2x32xf32>
    %cst_49 = arith.constant 1.000000e+00 : f32
    %150 = vector.broadcast %cst_49 : f32 to vector<2x32xf32>
    %151 = arith.subf %150, %144 : vector<2x32xf32>
    %152 = arith.mulf %151, %149 : vector<2x32xf32>
    %153 = arith.mulf %144, %119 : vector<2x32xf32>
    %154 = arith.addf %152, %153 : vector<2x32xf32>
    %cst_50 = arith.constant dense<0.000000e+00> : vector<2x8xf32>
    %155 = tpu.matmul %154, %7, %cst_50 {dimension_numbers = #tpu.dot_dimension_numbers<[1], [0], [0], [1], [0, 0, 1, 1], [], []>} : vector<2x32xf32>, vector<32x8xf32>, vector<2x8xf32> -> vector<2x8xf32>
    %156 = arith.addf %155, %19 : vector<2x8xf32>
    %c3 = arith.constant 3 : index
    %c0_51 = arith.constant 0 : index
    %c0_52 = arith.constant 0 : index
    %157 = vector.load %arg9[%c3, %c0_51, %c0_52] : memref<4x2x8xf32, #tpu.memory_space<vmem>>, vector<1x2x8xf32>
    %158 = vector.shape_cast %157 : vector<1x2x8xf32> to vector<2x8xf32>
    %159 = vector.shape_cast %156 : vector<2x8xf32> to vector<1x2x8xf32>
    tpu.vector_store %arg9[%c3, %c0_51, %c0_52], %159 {strides = array<i32>} : memref<4x2x8xf32, #tpu.memory_space<vmem>>, vector<1x2x8xf32>,
    return
  }
  func.func @transform_0(%arg0: i32) -> (i32, i32) {
    %c0_i32 = arith.constant 0 : i32
    %c0_i32_0 = arith.constant 0 : i32
    return %arg0, %c0_i32 : i32, i32
  }
  func.func @transform_1(%arg0: i32) -> (i32, i32) {
    %c0_i32 = arith.constant 0 : i32
    %c0_i32_0 = arith.constant 0 : i32
    %c0_i32_1 = arith.constant 0 : i32
    return %c0_i32, %c0_i32_0 : i32, i32
  }
  func.func @transform_2(%arg0: i32) -> (i32, i32) {
    %c0_i32 = arith.constant 0 : i32
    %c0_i32_0 = arith.constant 0 : i32
    %c0_i32_1 = arith.constant 0 : i32
    return %c0_i32, %c0_i32_0 : i32, i32
  }
  func.func @transform_3(%arg0: i32) -> (i32, i32) {
    %c0_i32 = arith.constant 0 : i32
    %c0_i32_0 = arith.constant 0 : i32
    %c0_i32_1 = arith.constant 0 : i32
    return %c0_i32, %c0_i32_0 : i32, i32
  }
  func.func @transform_4(%arg0: i32) -> (i32, i32) {
    %c0_i32 = arith.constant 0 : i32
    %c0_i32_0 = arith.constant 0 : i32
    %c0_i32_1 = arith.constant 0 : i32
    return %c0_i32, %c0_i32_0 : i32, i32
  }
  func.func @transform_5(%arg0: i32) -> (i32, i32) {
    %c0_i32 = arith.constant 0 : i32
    %c0_i32_0 = arith.constant 0 : i32
    %c0_i32_1 = arith.constant 0 : i32
    return %c0_i32, %c0_i32_0 : i32, i32
  }
  func.func @transform_6(%arg0: i32) -> (i32, i32) {
    %c0_i32 = arith.constant 0 : i32
    %c0_i32_0 = arith.constant 0 : i32
    %c0_i32_1 = arith.constant 0 : i32
    return %c0_i32, %c0_i32_0 : i32, i32
  }
  func.func @transform_7(%arg0: i32) -> (i32, i32) {
    %c0_i32 = arith.constant 0 : i32
    %c0_i32_0 = arith.constant 0 : i32
    return %arg0, %c0_i32 : i32, i32
  }
  func.func @transform_8(%arg0: i32) -> (i32, i32, i32) {
    %c0_i32 = arith.constant 0 : i32
    %c0_i32_0 = arith.constant 0 : i32
    %c0_i32_1 = arith.constant 0 : i32
    return %c0_i32, %arg0, %c0_i32_0 : i32, i32, i32
  }
}

</mosaic_0001>

<llo_original>
// kernel: tpu_custom_call.1
$region0: #{tpu_custom_call.1}
  #allocation0 [shape = 'u32[]', space=smem, size = 0x4, offset = 0x4, fixed_abs, tag = 'smem constant byte address 0x4 - core index']
  #allocation1 [shape = 'u32[144,128]{1,0:T(1,128)}', space=vmem, size = 0x12000, scoped, tag = 'internal scratch']
  %s0 = inlined_call_operand.vmem [shape: f32[2,8], index: 0, kind: input, shape index: {}]
  %s1 = inlined_call_operand.vmem [shape: bf16[8,128], index: 1, kind: input, shape index: {}]
  %s2 = inlined_call_operand.vmem [shape: f32[2,128], index: 2, kind: input, shape index: {}]
  %s3 = inlined_call_operand.hbm [shape: bf16[160,128], index: 3, kind: input, shape index: {}]
  %s4 = inlined_call_operand.vmem [shape: f32[1,128], index: 4, kind: input, shape index: {}]
  %s5 = inlined_call_operand.vmem [shape: bf16[32,8], index: 5, kind: input, shape index: {}]
  %s6 = inlined_call_operand.vmem [shape: f32[1,8], index: 6, kind: input, shape index: {}]
  %s7 = inlined_call_operand.vmem [shape: f32[2,32], index: 7, kind: input, shape index: {}]
  %s8 = inlined_call_operand.hbm [shape: f32[4,2,8], index: 8, kind: output, shape index: {}]
  %s9 = sld [smem:[#allocation0]]
  $region46: #{tpu_custom_call.1} parent=0
    _
  %s11 = ssub.s32 1, %s9
  %s12 = scalar_select 0, %s11, %s9
  $region1: #{tpu_custom_call.1} parent=0
    #allocation2 [shape = 'u8[40960]{0}', space=vmem, size = 0xa000, scoped, tag = 'input window, operand 3, single buffered']
    #allocation3 [shape = 's32[1]{0}', space=sflag, size = 0x4, scoped, tag = 'scoped memory for tpu_custom_call.1']
    #allocation4 [shape = 's32[1]{0}', space=sflag, size = 0x4, scoped, tag = 'scoped memory for tpu_custom_call.1']
    #allocation5 [shape = 'u8[4096]{0}', space=vmem, size = 0x1000, scoped, tag = 'output window, operand 0, single buffered']
    %13 = vsyncpa [#allocation3], 0
    %14 = vsyncpa [#allocation4], 0
    // Predicated region
    $region2: #{tpu_custom_call.1} parent=1 // pred_check
      _
    $region3: #{tpu_custom_call.1} parent=1 // pred_check_branch
      %16 = sbr.rel (0) target = $region5
    $region4: #{tpu_custom_call.1} parent=1 // pred_region
      _
    $region5: #{tpu_custom_call.1} parent=1 // pred_fallthru
      _
    // Predicated region
    $region6: #{tpu_custom_call.1} parent=1 // pred_check
      _
    $region7: #{tpu_custom_call.1} parent=1 // pred_check_branch
      %18 = sbr.rel (0) target = $region9
    $region8: #{tpu_custom_call.1} parent=1 // pred_region
      _
    $region9: #{tpu_custom_call.1} parent=1 // pred_fallthru
      _
    // Predicated region
    $region10: #{tpu_custom_call.1} parent=1 // pred_check
      _
    $region11: #{tpu_custom_call.1} parent=1 // pred_check_branch
      %20 = sbr.rel (0) target = $region13
    $region12: #{tpu_custom_call.1} parent=1 // pred_region
      _
    $region13: #{tpu_custom_call.1} parent=1 // pred_fallthru
      _
    // Predicated region
    $region14: #{tpu_custom_call.1} parent=1 // pred_check
      _
    $region15: #{tpu_custom_call.1} parent=1 // pred_check_branch
      %22 = sbr.rel (0) target = $region17
    $region16: #{tpu_custom_call.1} parent=1 // pred_region
      %s24 = ssub.s32 1280, 1280
      %25 = vsyncadd [#allocation3], %s24
      %s26 = sshll.u32 [#allocation2], 4
      %s27 = int_to_ptr.vmem [resolvable:$true] %s26
      %32 = dma.hbm_to_vmem [thread:$0]  %s3, 1280, %s27, [#allocation3], 64, 64, 4
    $region17: #{tpu_custom_call.1} parent=1 // pred_fallthru
      _
    // Predicated region
    $region18: #{tpu_custom_call.1} parent=1 // pred_check
      _
    $region19: #{tpu_custom_call.1} parent=1 // pred_check_branch
      %34 = sbr.rel (0) target = $region21
    $region20: #{tpu_custom_call.1} parent=1 // pred_region
      _
    $region21: #{tpu_custom_call.1} parent=1 // pred_fallthru
      _
    // Predicated region
    $region22: #{tpu_custom_call.1} parent=1 // pred_check
      _
    $region23: #{tpu_custom_call.1} parent=1 // pred_check_branch
      %36 = sbr.rel (0) target = $region25
    $region24: #{tpu_custom_call.1} parent=1 // pred_region
      _
    $region25: #{tpu_custom_call.1} parent=1 // pred_fallthru
      _
    // Predicated region
    $region26: #{tpu_custom_call.1} parent=1 // pred_check
      _
    $region27: #{tpu_custom_call.1} parent=1 // pred_check_branch
      %38 = sbr.rel (0) target = $region29
    $region28: #{tpu_custom_call.1} parent=1 // pred_region
      _
    $region29: #{tpu_custom_call.1} parent=1 // pred_fallthru
      _
    // Predicated region
    $region30: #{tpu_custom_call.1} parent=1 // pred_check
      _
    $region31: #{tpu_custom_call.1} parent=1 // pred_check_branch
      %40 = sbr.rel (0) target = $region33
    $region32: #{tpu_custom_call.1} parent=1 // pred_region
      _
    $region33: #{tpu_custom_call.1} parent=1 // pred_fallthru
      _
    // Predicated region
    $region34: #{tpu_custom_call.1} parent=1 // pred_check
      _
    $region35: #{tpu_custom_call.1} parent=1 // pred_check_branch
      %42 = sbr.rel (0) target = $region37
    $region36: #{tpu_custom_call.1} parent=1 // pred_region
      %43 = dma.done [#allocation3], 1280
    $region37: #{tpu_custom_call.1} parent=1 // pred_fallthru
      _
    %v44 = vld [vmem:[%s0] sm:$0x3]
    %v45 = vld [vmem:[%s7] sm:$0x3]
    %v46 = vld [vmem:[%s1] sm:$0xf]
    %v47 = vunpack.c.l.bf16 %v46
    %v48 = vld [vmem:[#allocation2] sm:$0xf]
    %v49 = vld [vmem:[#allocation2 + $0x4] sm:$0xf]
    %v50 = vld [vmem:[#allocation2 + $0x8] sm:$0xf]
    %v51 = vld [vmem:[#allocation2 + $0xc] sm:$0xf]
    %v52 = vld [vmem:[#allocation2 + $0x10] sm:$0xf]
    %v53 = vld [vmem:[#allocation2 + $0x14] sm:$0xf]
    %v54 = vld [vmem:[#allocation2 + $0x18] sm:$0xf]
    %v55 = vld [vmem:[#allocation2 + $0x1c] sm:$0xf]
    %v56 = vld [vmem:[#allocation2 + $0x20] sm:$0xf]
    %v57 = vld [vmem:[#allocation2 + $0x24] sm:$0xf]
    %v58 = vld [vmem:[#allocation2 + $0x28] sm:$0xf]
    %v59 = vld [vmem:[#allocation2 + $0x2c] sm:$0xf]
    %v60 = vld [vmem:[#allocation2 + $0x30] sm:$0xf]
    %v61 = vld [vmem:[#allocation2 + $0x34] sm:$0xf]
    %v62 = vld [vmem:[#allocation2 + $0x38] sm:$0xf]
    %v63 = vld [vmem:[#allocation2 + $0x3c] sm:$0xf]
    %v64 = vld [vmem:[#allocation2 + $0x40] sm:$0xf]
    %v65 = vld [vmem:[#allocation2 + $0x44] sm:$0xf]
    %v66 = vld [vmem:[#allocation2 + $0x48] sm:$0xf]
    %v67 = vld [vmem:[#allocation2 + $0x4c] sm:$0xf]
    %v68 = vunpack.c.l.bf16 %v48
    %v69 = vunpack.c.l.bf16 %v49
    %v70 = vunpack.c.l.bf16 %v50
    %v71 = vunpack.c.l.bf16 %v51
    %v72 = vunpack.c.l.bf16 %v52
    %v73 = vunpack.c.l.bf16 %v53
    %v74 = vunpack.c.l.bf16 %v54
    %v75 = vunpack.c.l.bf16 %v55
    %v76 = vunpack.c.l.bf16 %v56
    %v77 = vunpack.c.l.bf16 %v57
    %v78 = vunpack.c.l.bf16 %v58
    %v79 = vunpack.c.l.bf16 %v59
    %v80 = vunpack.c.l.bf16 %v60
    %v81 = vunpack.c.l.bf16 %v61
    %v82 = vunpack.c.l.bf16 %v62
    %v83 = vunpack.c.l.bf16 %v63
    %v84 = vunpack.c.l.bf16 %v64
    %v85 = vunpack.c.l.bf16 %v65
    %v86 = vunpack.c.l.bf16 %v66
    %v87 = vunpack.c.l.bf16 %v67
    %v88 = vld [vmem:[%s5] sm:$0xf]
    %v89 = vld [vmem:[%s5 + $0x4] sm:$0xf]
    %v90 = vld [vmem:[%s5 + $0x8] sm:$0xf]
    %v91 = vld [vmem:[%s5 + $0xc] sm:$0xf]
    %v92 = vunpack.c.l.bf16 %v88
    %v93 = vunpack.c.l.bf16 %v89
    %v94 = vunpack.c.l.bf16 %v90
    %v95 = vunpack.c.l.bf16 %v91
    %v96 = vld [vmem:[%s2] sm:$0x1]
    %v97 = vlaneseq
    %v98 = vshrl.u32 %v97, 7
    %v99 = vsub.s32 0, %v98
    %v100 = vrot.slane %v96, %v99
    %v101 = vld [vmem:[%s2 + $0x1] sm:$0x1]
    %v102 = vlaneseq
    %v103 = vshrl.u32 %v102, 7
    %v104 = vsub.s32 0, %v103
    %v105 = vrot.slane %v101, %v104
    %v106 = vld [vmem:[%s4] sm:$0x1]
    %v108 = vlaneseq
    %v109 = vshrl.u32 %v108, 7
    %v110 = vsub.s32 0, %v109
    %v111 = vrot.slane %v106, %v110
    %v113 = vld [vmem:[%s6] sm:$0x1]
    %v115 = vlaneseq
    %v116 = vshrl.u32 %v115, 7
    %v117 = vsub.s32 0, %v116
    %v118 = vrot.slane %v113, %v117
    %vm120 = vcmask 64512
    %v122 = vsel %vm120, %v44, 0
    %124 = vmatprep.subr.mxu0 0.0
    %125 = vmatpush1.msra.mxu0 0.0
    %126 = vmatprep.subr.mxu0 0.0
    %127 = vmatpush1.msra.mxu0 0.0
    %128 = vmatprep.subr.mxu0 0.0
    %129 = vmatpush1.msra.mxu0 0.0
    %130 = vmatprep.subr.mxu0 0.0
    %131 = vmatpush1.msra.mxu0 0.0
    %132 = vmatprep.subr.mxu0 0.0
    %133 = vmatpush1.msra.mxu0 0.0
    %134 = vmatprep.subr.mxu0 0.0
    %135 = vmatpush1.msra.mxu0 0.0
    %136 = vmatprep.subr.mxu0 0.0
    %137 = vmatpush1.msra.mxu0 0.0
    %138 = vmatprep.subr.mxu0 0.0
    %139 = vmatpush1.msra.mxu0 0.0
    %140 = vmatprep.subr.mxu0 0.0
    %141 = vmatpush1.msra.mxu0 0.0
    %142 = vmatprep.subr.mxu0 0.0
    %143 = vmatpush1.msra.mxu0 0.0
    %144 = vmatprep.subr.mxu0 0.0
    %145 = vmatpush1.msra.mxu0 0.0
    %146 = vmatprep.subr.mxu0 0.0
    %147 = vmatpush1.msra.mxu0 0.0
    %148 = vmatprep.subr.mxu0 0.0
    %149 = vmatpush1.msra.mxu0 0.0
    %150 = vmatprep.subr.mxu0 0.0
    %151 = vmatpush1.msra.mxu0 0.0
    %152 = vmatprep.subr.mxu0 0.0
    %153 = vmatpush1.msra.mxu0 0.0
    %154 = vmatprep.subr.mxu0 0.0
    %155 = vmatpush1.msra.mxu0 %v47
    %156 = vmatprep.subr.mxu0 0.0
    %157 = vmatpush2.msra.mxu0 0.0
    %158 = vmatprep.subr.mxu0 0.0
    %159 = vmatpush2.msra.mxu0 0.0
    %160 = vmatprep.subr.mxu0 0.0
    %161 = vmatpush2.msra.mxu0 0.0
    %162 = vmatprep.subr.mxu0 0.0
    %163 = vmatpush2.msra.mxu0 0.0
    %164 = vmatprep.subr.mxu0 0.0
    %165 = vmatpush2.msra.mxu0 0.0
    %166 = vmatprep.subr.mxu0 0.0
    %167 = vmatpush2.msra.mxu0 0.0
    %168 = vmatprep.subr.mxu0 0.0
    %169 = vmatpush2.msra.mxu0 0.0
    %170 = vmatprep.subr.mxu0 0.0
    %171 = vmatpush2.msra.mxu0 0.0
    %172 = vmatprep.subr.mxu0 0.0
    %173 = vmatpush2.msra.mxu0 0.0
    %174 = vmatprep.subr.mxu0 0.0
    %175 = vmatpush2.msra.mxu0 0.0
    %176 = vmatprep.subr.mxu0 0.0
    %177 = vmatpush2.msra.mxu0 0.0
    %178 = vmatprep.subr.mxu0 0.0
    %179 = vmatpush2.msra.mxu0 0.0
    %180 = vmatprep.subr.mxu0 0.0
    %181 = vmatpush2.msra.mxu0 0.0
    %182 = vmatprep.subr.mxu0 0.0
    %183 = vmatpush2.msra.mxu0 0.0
    %184 = vmatprep.subr.mxu0 0.0
    %185 = vmatpush2.msra.mxu0 0.0
    %186 = vmatprep.subr.mxu0 0.0
    %187 = vmatpush2.msra.mxu0 0.0
    %188 = vmatprep.mubr.f32.mxu0 0.0
    %189 = vmatmul.mubr.f32.gmra.mxu0 %v122
    %v190 = vpop.f32.mrf.mxu0
    %v191 = vadd.f32 0.0, %v190
    %v192 = vpop.f32.mrf.mxu0
    %193 = vdwg.mxu0
    %v194 = vmul.f32 %v191, %v100
    %v195 = vadd.f32 %v194, %v105
    %v196 = vmax.f32 %v195, 0.0
    %vm197 = vcmask 261120
    %v199 = vsel %vm197, %v45, 0
    %201 = vmatprep.subr.mxu0 0.0
    %202 = vmatpush1.msra.mxu0 %v83
    %203 = vmatprep.subr.mxu0 0.0
    %204 = vmatpush1.msra.mxu0 %v82
    %205 = vmatprep.subr.mxu0 0.0
    %206 = vmatpush1.msra.mxu0 %v81
    %207 = vmatprep.subr.mxu0 0.0
    %208 = vmatpush1.msra.mxu0 %v80
    %209 = vmatprep.subr.mxu0 0.0
    %210 = vmatpush1.msra.mxu0 %v79
    %211 = vmatprep.subr.mxu0 0.0
    %212 = vmatpush1.msra.mxu0 %v78
    %213 = vmatprep.subr.mxu0 0.0
    %214 = vmatpush1.msra.mxu0 %v77
    %215 = vmatprep.subr.mxu0 0.0
    %216 = vmatpush1.msra.mxu0 %v76
    %217 = vmatprep.subr.mxu0 0.0
    %218 = vmatpush1.msra.mxu0 %v75
    %219 = vmatprep.subr.mxu0 0.0
    %220 = vmatpush1.msra.mxu0 %v74
    %221 = vmatprep.subr.mxu0 0.0
    %222 = vmatpush1.msra.mxu0 %v73
    %223 = vmatprep.subr.mxu0 0.0
    %224 = vmatpush1.msra.mxu0 %v72
    %225 = vmatprep.subr.mxu0 0.0
    %226 = vmatpush1.msra.mxu0 %v71
    %227 = vmatprep.subr.mxu0 0.0
    %228 = vmatpush1.msra.mxu0 %v70
    %229 = vmatprep.subr.mxu0 0.0
    %230 = vmatpush1.msra.mxu0 %v69
    %231 = vmatprep.subr.mxu0 0.0
    %232 = vmatpush1.msra.mxu0 %v68
    %233 = vmatprep.subr.mxu0 0.0
    %234 = vmatpush2.msra.mxu0 0.0
    %235 = vmatprep.subr.mxu0 0.0
    %236 = vmatpush2.msra.mxu0 0.0
    %237 = vmatprep.subr.mxu0 0.0
    %238 = vmatpush2.msra.mxu0 0.0
    %239 = vmatprep.subr.mxu0 0.0
    %240 = vmatpush2.msra.mxu0 0.0
    %241 = vmatprep.subr.mxu0 0.0
    %242 = vmatpush2.msra.mxu0 0.0
    %243 = vmatprep.subr.mxu0 0.0
    %244 = vmatpush2.msra.mxu0 0.0
    %245 = vmatprep.subr.mxu0 0.0
    %246 = vmatpush2.msra.mxu0 0.0
    %247 = vmatprep.subr.mxu0 0.0
    %248 = vmatpush2.msra.mxu0 0.0
    %249 = vmatprep.subr.mxu0 0.0
    %250 = vmatpush2.msra.mxu0 0.0
    %251 = vmatprep.subr.mxu0 0.0
    %252 = vmatpush2.msra.mxu0 0.0
    %253 = vmatprep.subr.mxu0 0.0
    %254 = vmatpush2.msra.mxu0 0.0
    %255 = vmatprep.subr.mxu0 0.0
    %256 = vmatpush2.msra.mxu0 0.0
    %257 = vmatprep.subr.mxu0 0.0
    %258 = vmatpush2.msra.mxu0 %v87
    %259 = vmatprep.subr.mxu0 0.0
    %260 = vmatpush2.msra.mxu0 %v86
    %261 = vmatprep.subr.mxu0 0.0
    %262 = vmatpush2.msra.mxu0 %v85
    %263 = vmatprep.subr.mxu0 0.0
    %264 = vmatpush2.msra.mxu0 %v84
    %265 = vmatprep.mubr.f32.mxu0 %v199
    %266 = vmatmul.mubr.f32.gmra.mxu0 %v196
    %v267 = vpop.f32.mrf.mxu0
    %v268 = vadd.f32 %v111, %v267
    %v269 = vpop.f32.mrf.mxu0
    %270 = vdwg.mxu0
    %v271 = vxor.u32 %v268, 2147483648
    %v272 = vmul.f32 %v271, 1.442695
    %v273 = vpow.pop %v272
    %v274 = vadd.f32 %v273, 1.0
    %v275 = vrcp.pop %v274
    %v276 = vmul.f32 1.0, %v275
    %278 = vrot.lane.b32.xlu0 %v268, 32
    %v279 = vpop.permute.xlu0 %278
    %v281 = vmul.f32 %v276, %v279
    %283 = vrot.lane.b32.xlu0 %v281, 64
    %v284 = vpop.permute.xlu0 %283
    %v286 = vadd.f32 %v268, %v284
    %v287 = vtanh.pop %v286
    %v288 = vsub.f32 1.0, %v276
    %290 = vrot.lane.b32.xlu0 %v287, 96
    %v291 = vpop.permute.xlu0 %290
    %v293 = vmul.f32 %v288, %v291
    %294 = vrot.lane.b32.xlu0 %v45, 32
    %v295 = vpop.permute.xlu0 %294
    %v297 = vmul.f32 %v276, %v295
    %v298 = vadd.f32 %v293, %v297
    %300 = vrot.lane.b32.xlu0 %v298, 96
    %v301 = vpop.permute.xlu0 %300
    %v302 = vsel %vm197, %v301, 0
    %304 = vmatprep.subr.mxu0 0.0
    %305 = vmatpush1.msra.mxu0 0.0
    %306 = vmatprep.subr.mxu0 0.0
    %307 = vmatpush1.msra.mxu0 0.0
    %308 = vmatprep.subr.mxu0 0.0
    %309 = vmatpush1.msra.mxu0 0.0
    %310 = vmatprep.subr.mxu0 0.0
    %311 = vmatpush1.msra.mxu0 0.0
    %312 = vmatprep.subr.mxu0 0.0
    %313 = vmatpush1.msra.mxu0 0.0
    %314 = vmatprep.subr.mxu0 0.0
    %315 = vmatpush1.msra.mxu0 0.0
    %316 = vmatprep.subr.mxu0 0.0
    %317 = vmatpush1.msra.mxu0 0.0
    %318 = vmatprep.subr.mxu0 0.0
    %319 = vmatpush1.msra.mxu0 0.0
    %320 = vmatprep.subr.mxu0 0.0
    %321 = vmatpush1.msra.mxu0 0.0
    %322 = vmatprep.subr.mxu0 0.0
    %323 = vmatpush1.msra.mxu0 0.0
    %324 = vmatprep.subr.mxu0 0.0
    %325 = vmatpush1.msra.mxu0 0.0
    %326 = vmatprep.subr.mxu0 0.0
    %327 = vmatpush1.msra.mxu0 0.0
    %328 = vmatprep.subr.mxu0 0.0
    %329 = vmatpush1.msra.mxu0 %v95
    %330 = vmatprep.subr.mxu0 0.0
    %331 = vmatpush1.msra.mxu0 %v94
    %332 = vmatprep.subr.mxu0 0.0
    %333 = vmatpush1.msra.mxu0 %v93
    %334 = vmatprep.subr.mxu0 0.0
    %335 = vmatpush1.msra.mxu0 %v92
    %336 = vmatprep.subr.mxu0 0.0
    %337 = vmatpush2.msra.mxu0 0.0
    %338 = vmatprep.subr.mxu0 0.0
    %339 = vmatpush2.msra.mxu0 0.0
    %340 = vmatprep.subr.mxu0 0.0
    %341 = vmatpush2.msra.mxu0 0.0
    %342 = vmatprep.subr.mxu0 0.0
    %343 = vmatpush2.msra.mxu0 0.0
    %344 = vmatprep.subr.mxu0 0.0
    %345 = vmatpush2.msra.mxu0 0.0
    %346 = vmatprep.subr.mxu0 0.0
    %347 = vmatpush2.msra.mxu0 0.0
    %348 = vmatprep.subr.mxu0 0.0
    %349 = vmatpush2.msra.mxu0 0.0
    %350 = vmatprep.subr.mxu0 0.0
    %351 = vmatpush2.msra.mxu0 0.0
    %352 = vmatprep.subr.mxu0 0.0
    %353 = vmatpush2.msra.mxu0 0.0
    %354 = vmatprep.subr.mxu0 0.0
    %355 = vmatpush2.msra.mxu0 0.0
    %356 = vmatprep.subr.mxu0 0.0
    %357 = vmatpush2.msra.mxu0 0.0
    %358 = vmatprep.subr.mxu0 0.0
    %359 = vmatpush2.msra.mxu0 0.0
    %360 = vmatprep.subr.mxu0 0.0
    %361 = vmatpush2.msra.mxu0 0.0
    %362 = vmatprep.subr.mxu0 0.0
    %363 = vmatpush2.msra.mxu0 0.0
    %364 = vmatprep.subr.mxu0 0.0
    %365 = vmatpush2.msra.mxu0 0.0
    %366 = vmatprep.subr.mxu0 0.0
    %367 = vmatpush2.msra.mxu0 0.0
    %368 = vmatprep.mubr.f32.mxu0 0.0
    %369 = vmatmul.mubr.f32.gmra.mxu0 %v302
    %v370 = vpop.f32.mrf.mxu0
    %v371 = vadd.f32 %v118, %v370
    %v372 = vpop.f32.mrf.mxu0
    %373 = vdwg.mxu0
    %vm374 = vcmask 58368
    %375 = vst.msk [vmem:[#allocation5] sm:$0x3] %vm374, %v371
    %v377 = vsel %vm120, %v371, 0
    %379 = vmatprep.subr.mxu0 0.0
    %380 = vmatpush1.msra.mxu0 0.0
    %381 = vmatprep.subr.mxu0 0.0
    %382 = vmatpush1.msra.mxu0 0.0
    %383 = vmatprep.subr.mxu0 0.0
    %384 = vmatpush1.msra.mxu0 0.0
    %385 = vmatprep.subr.mxu0 0.0
    %386 = vmatpush1.msra.mxu0 0.0
    %387 = vmatprep.subr.mxu0 0.0
    %388 = vmatpush1.msra.mxu0 0.0
    %389 = vmatprep.subr.mxu0 0.0
    %390 = vmatpush1.msra.mxu0 0.0
    %391 = vmatprep.subr.mxu0 0.0
    %392 = vmatpush1.msra.mxu0 0.0
    %393 = vmatprep.subr.mxu0 0.0
    %394 = vmatpush1.msra.mxu0 0.0
    %395 = vmatprep.subr.mxu0 0.0
    %396 = vmatpush1.msra.mxu0 0.0
    %397 = vmatprep.subr.mxu0 0.0
    %398 = vmatpush1.msra.mxu0 0.0
    %399 = vmatprep.subr.mxu0 0.0
    %400 = vmatpush1.msra.mxu0 0.0
    %401 = vmatprep.subr.mxu0 0.0
    %402 = vmatpush1.msra.mxu0 0.0
    %403 = vmatprep.subr.mxu0 0.0
    %404 = vmatpush1.msra.mxu0 0.0
    %405 = vmatprep.subr.mxu0 0.0
    %406 = vmatpush1.msra.mxu0 0.0
    %407 = vmatprep.subr.mxu0 0.0
    %408 = vmatpush1.msra.mxu0 0.0
    %409 = vmatprep.subr.mxu0 0.0
    %410 = vmatpush1.msra.mxu0 %v47
    %411 = vmatprep.subr.mxu0 0.0
    %412 = vmatpush2.msra.mxu0 0.0
    %413 = vmatprep.subr.mxu0 0.0
    %414 = vmatpush2.msra.mxu0 0.0
    %415 = vmatprep.subr.mxu0 0.0
    %416 = vmatpush2.msra.mxu0 0.0
    %417 = vmatprep.subr.mxu0 0.0
    %418 = vmatpush2.msra.mxu0 0.0
    %419 = vmatprep.subr.mxu0 0.0
    %420 = vmatpush2.msra.mxu0 0.0
    %421 = vmatprep.subr.mxu0 0.0
    %422 = vmatpush2.msra.mxu0 0.0
    %423 = vmatprep.subr.mxu0 0.0
    %424 = vmatpush2.msra.mxu0 0.0
    %425 = vmatprep.subr.mxu0 0.0
    %426 = vmatpush2.msra.mxu0 0.0
    %427 = vmatprep.subr.mxu0 0.0
    %428 = vmatpush2.msra.mxu0 0.0
    %429 = vmatprep.subr.mxu0 0.0
    %430 = vmatpush2.msra.mxu0 0.0
    %431 = vmatprep.subr.mxu0 0.0
    %432 = vmatpush2.msra.mxu0 0.0
    %433 = vmatprep.subr.mxu0 0.0
    %434 = vmatpush2.msra.mxu0 0.0
    %435 = vmatprep.subr.mxu0 0.0
    %436 = vmatpush2.msra.mxu0 0.0
    %437 = vmatprep.subr.mxu0 0.0
    %438 = vmatpush2.msra.mxu0 0.0
    %439 = vmatprep.subr.mxu0 0.0
    %440 = vmatpush2.msra.mxu0 0.0
    %441 = vmatprep.subr.mxu0 0.0
    %442 = vmatpush2.msra.mxu0 0.0
    %443 = vmatprep.mubr.f32.mxu0 0.0
    %444 = vmatmul.mubr.f32.gmra.mxu0 %v377
    %v445 = vpop.f32.mrf.mxu0
    %v446 = vadd.f32 0.0, %v445
    %v447 = vpop.f32.mrf.mxu0
    %448 = vdwg.mxu0
    %v449 = vmul.f32 %v446, %v100
    %v450 = vadd.f32 %v449, %v105
    %v451 = vmax.f32 %v450, 0.0
    %452 = vmatprep.subr.mxu0 0.0
    %453 = vmatpush1.msra.mxu0 %v83
    %454 = vmatprep.subr.mxu0 0.0
    %455 = vmatpush1.msra.mxu0 %v82
    %456 = vmatprep.subr.mxu0 0.0
    %457 = vmatpush1.msra.mxu0 %v81
    %458 = vmatprep.subr.mxu0 0.0
    %459 = vmatpush1.msra.mxu0 %v80
    %460 = vmatprep.subr.mxu0 0.0
    %461 = vmatpush1.msra.mxu0 %v79
    %462 = vmatprep.subr.mxu0 0.0
    %463 = vmatpush1.msra.mxu0 %v78
    %464 = vmatprep.subr.mxu0 0.0
    %465 = vmatpush1.msra.mxu0 %v77
    %466 = vmatprep.subr.mxu0 0.0
    %467 = vmatpush1.msra.mxu0 %v76
    %468 = vmatprep.subr.mxu0 0.0
    %469 = vmatpush1.msra.mxu0 %v75
    %470 = vmatprep.subr.mxu0 0.0
    %471 = vmatpush1.msra.mxu0 %v74
    %472 = vmatprep.subr.mxu0 0.0
    %473 = vmatpush1.msra.mxu0 %v73
    %474 = vmatprep.subr.mxu0 0.0
    %475 = vmatpush1.msra.mxu0 %v72
    %476 = vmatprep.subr.mxu0 0.0
    %477 = vmatpush1.msra.mxu0 %v71
    %478 = vmatprep.subr.mxu0 0.0
    %479 = vmatpush1.msra.mxu0 %v70
    %480 = vmatprep.subr.mxu0 0.0
    %481 = vmatpush1.msra.mxu0 %v69
    %482 = vmatprep.subr.mxu0 0.0
    %483 = vmatpush1.msra.mxu0 %v68
    %484 = vmatprep.subr.mxu0 0.0
    %485 = vmatpush2.msra.mxu0 0.0
    %486 = vmatprep.subr.mxu0 0.0
    %487 = vmatpush2.msra.mxu0 0.0
    %488 = vmatprep.subr.mxu0 0.0
    %489 = vmatpush2.msra.mxu0 0.0
    %490 = vmatprep.subr.mxu0 0.0
    %491 = vmatpush2.msra.mxu0 0.0
    %492 = vmatprep.subr.mxu0 0.0
    %493 = vmatpush2.msra.mxu0 0.0
    %494 = vmatprep.subr.mxu0 0.0
    %495 = vmatpush2.msra.mxu0 0.0
    %496 = vmatprep.subr.mxu0 0.0
    %497 = vmatpush2.msra.mxu0 0.0
    %498 = vmatprep.subr.mxu0 0.0
    %499 = vmatpush2.msra.mxu0 0.0
    %500 = vmatprep.subr.mxu0 0.0
    %501 = vmatpush2.msra.mxu0 0.0
    %502 = vmatprep.subr.mxu0 0.0
    %503 = vmatpush2.msra.mxu0 0.0
    %504 = vmatprep.subr.mxu0 0.0
    %505 = vmatpush2.msra.mxu0 0.0
    %506 = vmatprep.subr.mxu0 0.0
    %507 = vmatpush2.msra.mxu0 0.0
    %508 = vmatprep.subr.mxu0 0.0
    %509 = vmatpush2.msra.mxu0 %v87
    %510 = vmatprep.subr.mxu0 0.0
    %511 = vmatpush2.msra.mxu0 %v86
    %512 = vmatprep.subr.mxu0 0.0
    %513 = vmatpush2.msra.mxu0 %v85
    %514 = vmatprep.subr.mxu0 0.0
    %515 = vmatpush2.msra.mxu0 %v84
    %516 = vmatprep.mubr.f32.mxu0 %v302
    %517 = vmatmul.mubr.f32.gmra.mxu0 %v451
    %v518 = vpop.f32.mrf.mxu0
    %v519 = vadd.f32 %v111, %v518
    %v520 = vpop.f32.mrf.mxu0
    %521 = vdwg.mxu0
    %v522 = vxor.u32 %v519, 2147483648
    %v523 = vmul.f32 %v522, 1.442695
    %v524 = vpow.pop %v523
    %v525 = vadd.f32 %v524, 1.0
    %v526 = vrcp.pop %v525
    %v527 = vmul.f32 1.0, %v526
    %529 = vrot.lane.b32.xlu0 %v519, 32
    %v530 = vpop.permute.xlu0 %529
    %v532 = vmul.f32 %v527, %v530
    %534 = vrot.lane.b32.xlu0 %v532, 64
    %v535 = vpop.permute.xlu0 %534
    %v537 = vadd.f32 %v519, %v535
    %v538 = vtanh.pop %v537
    %v539 = vsub.f32 1.0, %v527
    %541 = vrot.lane.b32.xlu0 %v538, 96
    %v542 = vpop.permute.xlu0 %541
    %v544 = vmul.f32 %v539, %v542
    %v545 = vmul.f32 %v527, %v298
    %v546 = vadd.f32 %v544, %v545
    %548 = vrot.lane.b32.xlu0 %v546, 96
    %v549 = vpop.permute.xlu0 %548
    %v550 = vsel %vm197, %v549, 0
    %552 = vmatprep.subr.mxu0 0.0
    %553 = vmatpush1.msra.mxu0 0.0
    %554 = vmatprep.subr.mxu0 0.0
    %555 = vmatpush1.msra.mxu0 0.0
    %556 = vmatprep.subr.mxu0 0.0
    %557 = vmatpush1.msra.mxu0 0.0
    %558 = vmatprep.subr.mxu0 0.0
    %559 = vmatpush1.msra.mxu0 0.0
    %560 = vmatprep.subr.mxu0 0.0
    %561 = vmatpush1.msra.mxu0 0.0
    %562 = vmatprep.subr.mxu0 0.0
    %563 = vmatpush1.msra.mxu0 0.0
    %564 = vmatprep.subr.mxu0 0.0
    %565 = vmatpush1.msra.mxu0 0.0
    %566 = vmatprep.subr.mxu0 0.0
    %567 = vmatpush1.msra.mxu0 0.0
    %568 = vmatprep.subr.mxu0 0.0
    %569 = vmatpush1.msra.mxu0 0.0
    %570 = vmatprep.subr.mxu0 0.0
    %571 = vmatpush1.msra.mxu0 0.0
    %572 = vmatprep.subr.mxu0 0.0
    %573 = vmatpush1.msra.mxu0 0.0
    %574 = vmatprep.subr.mxu0 0.0
    %575 = vmatpush1.msra.mxu0 0.0
    %576 = vmatprep.subr.mxu0 0.0
    %577 = vmatpush1.msra.mxu0 %v95
    %578 = vmatprep.subr.mxu0 0.0
    %579 = vmatpush1.msra.mxu0 %v94
    %580 = vmatprep.subr.mxu0 0.0
    %581 = vmatpush1.msra.mxu0 %v93
    %582 = vmatprep.subr.mxu0 0.0
    %583 = vmatpush1.msra.mxu0 %v92
    %584 = vmatprep.subr.mxu0 0.0
    %585 = vmatpush2.msra.mxu0 0.0
    %586 = vmatprep.subr.mxu0 0.0
    %587 = vmatpush2.msra.mxu0 0.0
    %588 = vmatprep.subr.mxu0 0.0
    %589 = vmatpush2.msra.mxu0 0.0
    %590 = vmatprep.subr.mxu0 0.0
    %591 = vmatpush2.msra.mxu0 0.0
    %592 = vmatprep.subr.mxu0 0.0
    %593 = vmatpush2.msra.mxu0 0.0
    %594 = vmatprep.subr.mxu0 0.0
    %595 = vmatpush2.msra.mxu0 0.0
    %596 = vmatprep.subr.mxu0 0.0
    %597 = vmatpush2.msra.mxu0 0.0
    %598 = vmatprep.subr.mxu0 0.0
    %599 = vmatpush2.msra.mxu0 0.0
    %600 = vmatprep.subr.mxu0 0.0
    %601 = vmatpush2.msra.mxu0 0.0
    %602 = vmatprep.subr.mxu0 0.0
    %603 = vmatpush2.msra.mxu0 0.0
    %604 = vmatprep.subr.mxu0 0.0
    %605 = vmatpush2.msra.mxu0 0.0
    %606 = vmatprep.subr.mxu0 0.0
    %607 = vmatpush2.msra.mxu0 0.0
    %608 = vmatprep.subr.mxu0 0.0
    %609 = vmatpush2.msra.mxu0 0.0
    %610 = vmatprep.subr.mxu0 0.0
    %611 = vmatpush2.msra.mxu0 0.0
    %612 = vmatprep.subr.mxu0 0.0
    %613 = vmatpush2.msra.mxu0 0.0
    %614 = vmatprep.subr.mxu0 0.0
    %615 = vmatpush2.msra.mxu0 0.0
    %616 = vmatprep.mubr.f32.mxu0 0.0
    %617 = vmatmul.mubr.f32.gmra.mxu0 %v550
    %v618 = vpop.f32.mrf.mxu0
    %v619 = vadd.f32 %v118, %v618
    %v620 = vpop.f32.mrf.mxu0
    %621 = vdwg.mxu0
    %s622 = scalar_lea.vmem [#allocation5], 2
    %623 = vst.msk [vmem:[%s622] sm:$0x3] %vm374, %v619
    %v625 = vsel %vm120, %v619, 0
    %627 = vmatprep.subr.mxu0 0.0
    %628 = vmatpush1.msra.mxu0 0.0
    %629 = vmatprep.subr.mxu0 0.0
    %630 = vmatpush1.msra.mxu0 0.0
    %631 = vmatprep.subr.mxu0 0.0
    %632 = vmatpush1.msra.mxu0 0.0
    %633 = vmatprep.subr.mxu0 0.0
    %634 = vmatpush1.msra.mxu0 0.0
    %635 = vmatprep.subr.mxu0 0.0
    %636 = vmatpush1.msra.mxu0 0.0
    %637 = vmatprep.subr.mxu0 0.0
    %638 = vmatpush1.msra.mxu0 0.0
    %639 = vmatprep.subr.mxu0 0.0
    %640 = vmatpush1.msra.mxu0 0.0
    %641 = vmatprep.subr.mxu0 0.0
    %642 = vmatpush1.msra.mxu0 0.0
    %643 = vmatprep.subr.mxu0 0.0
    %644 = vmatpush1.msra.mxu0 0.0
    %645 = vmatprep.subr.mxu0 0.0
    %646 = vmatpush1.msra.mxu0 0.0
    %647 = vmatprep.subr.mxu0 0.0
    %648 = vmatpush1.msra.mxu0 0.0
    %649 = vmatprep.subr.mxu0 0.0
    %650 = vmatpush1.msra.mxu0 0.0
    %651 = vmatprep.subr.mxu0 0.0
    %652 = vmatpush1.msra.mxu0 0.0
    %653 = vmatprep.subr.mxu0 0.0
    %654 = vmatpush1.msra.mxu0 0.0
    %655 = vmatprep.subr.mxu0 0.0
    %656 = vmatpush1.msra.mxu0 0.0
    %657 = vmatprep.subr.mxu0 0.0
    %658 = vmatpush1.msra.mxu0 %v47
    %659 = vmatprep.subr.mxu0 0.0
    %660 = vmatpush2.msra.mxu0 0.0
    %661 = vmatprep.subr.mxu0 0.0
    %662 = vmatpush2.msra.mxu0 0.0
    %663 = vmatprep.subr.mxu0 0.0
    %664 = vmatpush2.msra.mxu0 0.0
    %665 = vmatprep.subr.mxu0 0.0
    %666 = vmatpush2.msra.mxu0 0.0
    %667 = vmatprep.subr.mxu0 0.0
    %668 = vmatpush2.msra.mxu0 0.0
    %669 = vmatprep.subr.mxu0 0.0
    %670 = vmatpush2.msra.mxu0 0.0
    %671 = vmatprep.subr.mxu0 0.0
    %672 = vmatpush2.msra.mxu0 0.0
    %673 = vmatprep.subr.mxu0 0.0
    %674 = vmatpush2.msra.mxu0 0.0
    %675 = vmatprep.subr.mxu0 0.0
    %676 = vmatpush2.msra.mxu0 0.0
    %677 = vmatprep.subr.mxu0 0.0
    %678 = vmatpush2.msra.mxu0 0.0
    %679 = vmatprep.subr.mxu0 0.0
    %680 = vmatpush2.msra.mxu0 0.0
    %681 = vmatprep.subr.mxu0 0.0
    %682 = vmatpush2.msra.mxu0 0.0
    %683 = vmatprep.subr.mxu0 0.0
    %684 = vmatpush2.msra.mxu0 0.0
    %685 = vmatprep.subr.mxu0 0.0
    %686 = vmatpush2.msra.mxu0 0.0
    %687 = vmatprep.subr.mxu0 0.0
    %688 = vmatpush2.msra.mxu0 0.0
    %689 = vmatprep.subr.mxu0 0.0
    %690 = vmatpush2.msra.mxu0 0.0
    %691 = vmatprep.mubr.f32.mxu0 0.0
    %692 = vmatmul.mubr.f32.gmra.mxu0 %v625
    %v693 = vpop.f32.mrf.mxu0
    %v694 = vadd.f32 0.0, %v693
    %v695 = vpop.f32.mrf.mxu0
    %696 = vdwg.mxu0
    %v697 = vmul.f32 %v694, %v100
    %v698 = vadd.f32 %v697, %v105
    %v699 = vmax.f32 %v698, 0.0
    %700 = vmatprep.subr.mxu0 0.0
    %701 = vmatpush1.msra.mxu0 %v83
    %702 = vmatprep.subr.mxu0 0.0
    %703 = vmatpush1.msra.mxu0 %v82
    %704 = vmatprep.subr.mxu0 0.0
    %705 = vmatpush1.msra.mxu0 %v81
    %706 = vmatprep.subr.mxu0 0.0
    %707 = vmatpush1.msra.mxu0 %v80
    %708 = vmatprep.subr.mxu0 0.0
    %709 = vmatpush1.msra.mxu0 %v79
    %710 = vmatprep.subr.mxu0 0.0
    %711 = vmatpush1.msra.mxu0 %v78
    %712 = vmatprep.subr.mxu0 0.0
    %713 = vmatpush1.msra.mxu0 %v77
    %714 = vmatprep.subr.mxu0 0.0
    %715 = vmatpush1.msra.mxu0 %v76
    %716 = vmatprep.subr.mxu0 0.0
    %717 = vmatpush1.msra.mxu0 %v75
    %718 = vmatprep.subr.mxu0 0.0
    %719 = vmatpush1.msra.mxu0 %v74
    %720 = vmatprep.subr.mxu0 0.0
    %721 = vmatpush1.msra.mxu0 %v73
    %722 = vmatprep.subr.mxu0 0.0
    %723 = vmatpush1.msra.mxu0 %v72
    %724 = vmatprep.subr.mxu0 0.0
    %725 = vmatpush1.msra.mxu0 %v71
    %726 = vmatprep.subr.mxu0 0.0
    %727 = vmatpush1.msra.mxu0 %v70
    %728 = vmatprep.subr.mxu0 0.0
    %729 = vmatpush1.msra.mxu0 %v69
    %730 = vmatprep.subr.mxu0 0.0
    %731 = vmatpush1.msra.mxu0 %v68
    %732 = vmatprep.subr.mxu0 0.0
    %733 = vmatpush2.msra.mxu0 0.0
    %734 = vmatprep.subr.mxu0 0.0
    %735 = vmatpush2.msra.mxu0 0.0
    %736 = vmatprep.subr.mxu0 0.0
    %737 = vmatpush2.msra.mxu0 0.0
    %738 = vmatprep.subr.mxu0 0.0
    %739 = vmatpush2.msra.mxu0 0.0
    %740 = vmatprep.subr.mxu0 0.0
    %741 = vmatpush2.msra.mxu0 0.0
    %742 = vmatprep.subr.mxu0 0.0
    %743 = vmatpush2.msra.mxu0 0.0
    %744 = vmatprep.subr.mxu0 0.0
    %745 = vmatpush2.msra.mxu0 0.0
    %746 = vmatprep.subr.mxu0 0.0
    %747 = vmatpush2.msra.mxu0 0.0
    %748 = vmatprep.subr.mxu0 0.0
    %749 = vmatpush2.msra.mxu0 0.0
    %750 = vmatprep.subr.mxu0 0.0
    %751 = vmatpush2.msra.mxu0 0.0
    %752 = vmatprep.subr.mxu0 0.0
    %753 = vmatpush2.msra.mxu0 0.0
    %754 = vmatprep.subr.mxu0 0.0
    %755 = vmatpush2.msra.mxu0 0.0
    %756 = vmatprep.subr.mxu0 0.0
    %757 = vmatpush2.msra.mxu0 %v87
    %758 = vmatprep.subr.mxu0 0.0
    %759 = vmatpush2.msra.mxu0 %v86
    %760 = vmatprep.subr.mxu0 0.0
    %761 = vmatpush2.msra.mxu0 %v85
    %762 = vmatprep.subr.mxu0 0.0
    %763 = vmatpush2.msra.mxu0 %v84
    %764 = vmatprep.mubr.f32.mxu0 %v550
    %765 = vmatmul.mubr.f32.gmra.mxu0 %v699
    %v766 = vpop.f32.mrf.mxu0
    %v767 = vadd.f32 %v111, %v766
    %v768 = vpop.f32.mrf.mxu0
    %769 = vdwg.mxu0
    %v770 = vxor.u32 %v767, 2147483648
    %v771 = vmul.f32 %v770, 1.442695
    %v772 = vpow.pop %v771
    %v773 = vadd.f32 %v772, 1.0
    %v774 = vrcp.pop %v773
    %v775 = vmul.f32 1.0, %v774
    %777 = vrot.lane.b32.xlu0 %v767, 32
    %v778 = vpop.permute.xlu0 %777
    %v780 = vmul.f32 %v775, %v778
    %782 = vrot.lane.b32.xlu0 %v780, 64
    %v783 = vpop.permute.xlu0 %782
    %v785 = vadd.f32 %v767, %v783
    %v786 = vtanh.pop %v785
    %v787 = vsub.f32 1.0, %v775
    %789 = vrot.lane.b32.xlu0 %v786, 96
    %v790 = vpop.permute.xlu0 %789
    %v792 = vmul.f32 %v787, %v790
    %v793 = vmul.f32 %v775, %v546
    %v794 = vadd.f32 %v792, %v793
    %796 = vrot.lane.b32.xlu0 %v794, 96
    %v797 = vpop.permute.xlu0 %796
    %v798 = vsel %vm197, %v797, 0
    %800 = vmatprep.subr.mxu0 0.0
    %801 = vmatpush1.msra.mxu0 0.0
    %802 = vmatprep.subr.mxu0 0.0
    %803 = vmatpush1.msra.mxu0 0.0
    %804 = vmatprep.subr.mxu0 0.0
    %805 = vmatpush1.msra.mxu0 0.0
    %806 = vmatprep.subr.mxu0 0.0
    %807 = vmatpush1.msra.mxu0 0.0
    %808 = vmatprep.subr.mxu0 0.0
    %809 = vmatpush1.msra.mxu0 0.0
    %810 = vmatprep.subr.mxu0 0.0
    %811 = vmatpush1.msra.mxu0 0.0
    %812 = vmatprep.subr.mxu0 0.0
    %813 = vmatpush1.msra.mxu0 0.0
    %814 = vmatprep.subr.mxu0 0.0
    %815 = vmatpush1.msra.mxu0 0.0
    %816 = vmatprep.subr.mxu0 0.0
    %817 = vmatpush1.msra.mxu0 0.0
    %818 = vmatprep.subr.mxu0 0.0
    %819 = vmatpush1.msra.mxu0 0.0
    %820 = vmatprep.subr.mxu0 0.0
    %821 = vmatpush1.msra.mxu0 0.0
    %822 = vmatprep.subr.mxu0 0.0
    %823 = vmatpush1.msra.mxu0 0.0
    %824 = vmatprep.subr.mxu0 0.0
    %825 = vmatpush1.msra.mxu0 %v95
    %826 = vmatprep.subr.mxu0 0.0
    %827 = vmatpush1.msra.mxu0 %v94
    %828 = vmatprep.subr.mxu0 0.0
    %829 = vmatpush1.msra.mxu0 %v93
    %830 = vmatprep.subr.mxu0 0.0
    %831 = vmatpush1.msra.mxu0 %v92
    %832 = vmatprep.subr.mxu0 0.0
    %833 = vmatpush2.msra.mxu0 0.0
    %834 = vmatprep.subr.mxu0 0.0
    %835 = vmatpush2.msra.mxu0 0.0
    %836 = vmatprep.subr.mxu0 0.0
    %837 = vmatpush2.msra.mxu0 0.0
    %838 = vmatprep.subr.mxu0 0.0
    %839 = vmatpush2.msra.mxu0 0.0
    %840 = vmatprep.subr.mxu0 0.0
    %841 = vmatpush2.msra.mxu0 0.0
    %842 = vmatprep.subr.mxu0 0.0
    %843 = vmatpush2.msra.mxu0 0.0
    %844 = vmatprep.subr.mxu0 0.0
    %845 = vmatpush2.msra.mxu0 0.0
    %846 = vmatprep.subr.mxu0 0.0
    %847 = vmatpush2.msra.mxu0 0.0
    %848 = vmatprep.subr.mxu0 0.0
    %849 = vmatpush2.msra.mxu0 0.0
    %850 = vmatprep.subr.mxu0 0.0
    %851 = vmatpush2.msra.mxu0 0.0
    %852 = vmatprep.subr.mxu0 0.0
    %853 = vmatpush2.msra.mxu0 0.0
    %854 = vmatprep.subr.mxu0 0.0
    %855 = vmatpush2.msra.mxu0 0.0
    %856 = vmatprep.subr.mxu0 0.0
    %857 = vmatpush2.msra.mxu0 0.0
    %858 = vmatprep.subr.mxu0 0.0
    %859 = vmatpush2.msra.mxu0 0.0
    %860 = vmatprep.subr.mxu0 0.0
    %861 = vmatpush2.msra.mxu0 0.0
    %862 = vmatprep.subr.mxu0 0.0
    %863 = vmatpush2.msra.mxu0 0.0
    %864 = vmatprep.mubr.f32.mxu0 0.0
    %865 = vmatmul.mubr.f32.gmra.mxu0 %v798
    %v866 = vpop.f32.mrf.mxu0
    %v867 = vadd.f32 %v118, %v866
    %v868 = vpop.f32.mrf.mxu0
    %869 = vdwg.mxu0
    %s870 = scalar_lea.vmem [#allocation5], 4
    %871 = vst.msk [vmem:[%s870] sm:$0x3] %vm374, %v867
    %v873 = vsel %vm120, %v867, 0
    %875 = vmatprep.subr.mxu0 0.0
    %876 = vmatpush1.msra.mxu0 0.0
    %877 = vmatprep.subr.mxu0 0.0
    %878 = vmatpush1.msra.mxu0 0.0
    %879 = vmatprep.subr.mxu0 0.0
    %880 = vmatpush1.msra.mxu0 0.0
    %881 = vmatprep.subr.mxu0 0.0
    %882 = vmatpush1.msra.mxu0 0.0
    %883 = vmatprep.subr.mxu0 0.0
    %884 = vmatpush1.msra.mxu0 0.0
    %885 = vmatprep.subr.mxu0 0.0
    %886 = vmatpush1.msra.mxu0 0.0
    %887 = vmatprep.subr.mxu0 0.0
    %888 = vmatpush1.msra.mxu0 0.0
    %889 = vmatprep.subr.mxu0 0.0
    %890 = vmatpush1.msra.mxu0 0.0
    %891 = vmatprep.subr.mxu0 0.0
    %892 = vmatpush1.msra.mxu0 0.0
    %893 = vmatprep.subr.mxu0 0.0
    %894 = vmatpush1.msra.mxu0 0.0
    %895 = vmatprep.subr.mxu0 0.0
    %896 = vmatpush1.msra.mxu0 0.0
    %897 = vmatprep.subr.mxu0 0.0
    %898 = vmatpush1.msra.mxu0 0.0
    %899 = vmatprep.subr.mxu0 0.0
    %900 = vmatpush1.msra.mxu0 0.0
    %901 = vmatprep.subr.mxu0 0.0
    %902 = vmatpush1.msra.mxu0 0.0
    %903 = vmatprep.subr.mxu0 0.0
    %904 = vmatpush1.msra.mxu0 0.0
    %905 = vmatprep.subr.mxu0 0.0
    %906 = vmatpush1.msra.mxu0 %v47
    %907 = vmatprep.subr.mxu0 0.0
    %908 = vmatpush2.msra.mxu0 0.0
    %909 = vmatprep.subr.mxu0 0.0
    %910 = vmatpush2.msra.mxu0 0.0
    %911 = vmatprep.subr.mxu0 0.0
    %912 = vmatpush2.msra.mxu0 0.0
    %913 = vmatprep.subr.mxu0 0.0
    %914 = vmatpush2.msra.mxu0 0.0
    %915 = vmatprep.subr.mxu0 0.0
    %916 = vmatpush2.msra.mxu0 0.0
    %917 = vmatprep.subr.mxu0 0.0
    %918 = vmatpush2.msra.mxu0 0.0
    %919 = vmatprep.subr.mxu0 0.0
    %920 = vmatpush2.msra.mxu0 0.0
    %921 = vmatprep.subr.mxu0 0.0
    %922 = vmatpush2.msra.mxu0 0.0
    %923 = vmatprep.subr.mxu0 0.0
    %924 = vmatpush2.msra.mxu0 0.0
    %925 = vmatprep.subr.mxu0 0.0
    %926 = vmatpush2.msra.mxu0 0.0
    %927 = vmatprep.subr.mxu0 0.0
    %928 = vmatpush2.msra.mxu0 0.0
    %929 = vmatprep.subr.mxu0 0.0
    %930 = vmatpush2.msra.mxu0 0.0
    %931 = vmatprep.subr.mxu0 0.0
    %932 = vmatpush2.msra.mxu0 0.0
    %933 = vmatprep.subr.mxu0 0.0
    %934 = vmatpush2.msra.mxu0 0.0
    %935 = vmatprep.subr.mxu0 0.0
    %936 = vmatpush2.msra.mxu0 0.0
    %937 = vmatprep.subr.mxu0 0.0
    %938 = vmatpush2.msra.mxu0 0.0
    %939 = vmatprep.mubr.f32.mxu0 0.0
    %940 = vmatmul.mubr.f32.gmra.mxu0 %v873
    %v941 = vpop.f32.mrf.mxu0
    %v942 = vadd.f32 0.0, %v941
    %v943 = vpop.f32.mrf.mxu0
    %944 = vdwg.mxu0
    %v945 = vmul.f32 %v942, %v100
    %v946 = vadd.f32 %v945, %v105
    %v947 = vmax.f32 %v946, 0.0
    %948 = vmatprep.subr.mxu0 0.0
    %949 = vmatpush1.msra.mxu0 %v83
    %950 = vmatprep.subr.mxu0 0.0
    %951 = vmatpush1.msra.mxu0 %v82
    %952 = vmatprep.subr.mxu0 0.0
    %953 = vmatpush1.msra.mxu0 %v81
    %954 = vmatprep.subr.mxu0 0.0
    %955 = vmatpush1.msra.mxu0 %v80
    %956 = vmatprep.subr.mxu0 0.0
    %957 = vmatpush1.msra.mxu0 %v79
    %958 = vmatprep.subr.mxu0 0.0
    %959 = vmatpush1.msra.mxu0 %v78
    %960 = vmatprep.subr.mxu0 0.0
    %961 = vmatpush1.msra.mxu0 %v77
    %962 = vmatprep.subr.mxu0 0.0
    %963 = vmatpush1.msra.mxu0 %v76
    %964 = vmatprep.subr.mxu0 0.0
    %965 = vmatpush1.msra.mxu0 %v75
    %966 = vmatprep.subr.mxu0 0.0
    %967 = vmatpush1.msra.mxu0 %v74
    %968 = vmatprep.subr.mxu0 0.0
    %969 = vmatpush1.msra.mxu0 %v73
    %970 = vmatprep.subr.mxu0 0.0
    %971 = vmatpush1.msra.mxu0 %v72
    %972 = vmatprep.subr.mxu0 0.0
    %973 = vmatpush1.msra.mxu0 %v71
    %974 = vmatprep.subr.mxu0 0.0
    %975 = vmatpush1.msra.mxu0 %v70
    %976 = vmatprep.subr.mxu0 0.0
    %977 = vmatpush1.msra.mxu0 %v69
    %978 = vmatprep.subr.mxu0 0.0
    %979 = vmatpush1.msra.mxu0 %v68
    %980 = vmatprep.subr.mxu0 0.0
    %981 = vmatpush2.msra.mxu0 0.0
    %982 = vmatprep.subr.mxu0 0.0
    %983 = vmatpush2.msra.mxu0 0.0
    %984 = vmatprep.subr.mxu0 0.0
    %985 = vmatpush2.msra.mxu0 0.0
    %986 = vmatprep.subr.mxu0 0.0
    %987 = vmatpush2.msra.mxu0 0.0
    %988 = vmatprep.subr.mxu0 0.0
    %989 = vmatpush2.msra.mxu0 0.0
    %990 = vmatprep.subr.mxu0 0.0
    %991 = vmatpush2.msra.mxu0 0.0
    %992 = vmatprep.subr.mxu0 0.0
    %993 = vmatpush2.msra.mxu0 0.0
    %994 = vmatprep.subr.mxu0 0.0
    %995 = vmatpush2.msra.mxu0 0.0
    %996 = vmatprep.subr.mxu0 0.0
    %997 = vmatpush2.msra.mxu0 0.0
    %998 = vmatprep.subr.mxu0 0.0
    %999 = vmatpush2.msra.mxu0 0.0
    %1000 = vmatprep.subr.mxu0 0.0
    %1001 = vmatpush2.msra.mxu0 0.0
    %1002 = vmatprep.subr.mxu0 0.0
    %1003 = vmatpush2.msra.mxu0 0.0
    %1004 = vmatprep.subr.mxu0 0.0
    %1005 = vmatpush2.msra.mxu0 %v87
    %1006 = vmatprep.subr.mxu0 0.0
    %1007 = vmatpush2.msra.mxu0 %v86
    %1008 = vmatprep.subr.mxu0 0.0
    %1009 = vmatpush2.msra.mxu0 %v85
    %1010 = vmatprep.subr.mxu0 0.0
    %1011 = vmatpush2.msra.mxu0 %v84
    %1012 = vmatprep.mubr.f32.mxu0 %v798
    %1013 = vmatmul.mubr.f32.gmra.mxu0 %v947
    %v1014 = vpop.f32.mrf.mxu0
    %v1015 = vadd.f32 %v111, %v1014
    %v1016 = vpop.f32.mrf.mxu0
    %1017 = vdwg.mxu0
    %v1018 = vxor.u32 %v1015, 2147483648
    %v1019 = vmul.f32 %v1018, 1.442695
    %v1020 = vpow.pop %v1019
    %v1021 = vadd.f32 %v1020, 1.0
    %v1022 = vrcp.pop %v1021
    %v1023 = vmul.f32 1.0, %v1022
    %1025 = vrot.lane.b32.xlu0 %v1015, 32
    %v1026 = vpop.permute.xlu0 %1025
    %v1028 = vmul.f32 %v1023, %v1026
    %1030 = vrot.lane.b32.xlu0 %v1028, 64
    %v1031 = vpop.permute.xlu0 %1030
    %v1033 = vadd.f32 %v1015, %v1031
    %v1034 = vtanh.pop %v1033
    %v1035 = vsub.f32 1.0, %v1023
    %1037 = vrot.lane.b32.xlu0 %v1034, 96
    %v1038 = vpop.permute.xlu0 %1037
    %v1040 = vmul.f32 %v1035, %v1038
    %v1041 = vmul.f32 %v1023, %v794
    %v1042 = vadd.f32 %v1040, %v1041
    %1044 = vrot.lane.b32.xlu0 %v1042, 96
    %v1045 = vpop.permute.xlu0 %1044
    %v1046 = vsel %vm197, %v1045, 0
    %1048 = vmatprep.subr.mxu0 0.0
    %1049 = vmatpush1.msra.mxu0 0.0
    %1050 = vmatprep.subr.mxu0 0.0
    %1051 = vmatpush1.msra.mxu0 0.0
    %1052 = vmatprep.subr.mxu0 0.0
    %1053 = vmatpush1.msra.mxu0 0.0
    %1054 = vmatprep.subr.mxu0 0.0
    %1055 = vmatpush1.msra.mxu0 0.0
    %1056 = vmatprep.subr.mxu0 0.0
    %1057 = vmatpush1.msra.mxu0 0.0
    %1058 = vmatprep.subr.mxu0 0.0
    %1059 = vmatpush1.msra.mxu0 0.0
    %1060 = vmatprep.subr.mxu0 0.0
    %1061 = vmatpush1.msra.mxu0 0.0
    %1062 = vmatprep.subr.mxu0 0.0
    %1063 = vmatpush1.msra.mxu0 0.0
    %1064 = vmatprep.subr.mxu0 0.0
    %1065 = vmatpush1.msra.mxu0 0.0
    %1066 = vmatprep.subr.mxu0 0.0
    %1067 = vmatpush1.msra.mxu0 0.0
    %1068 = vmatprep.subr.mxu0 0.0
    %1069 = vmatpush1.msra.mxu0 0.0
    %1070 = vmatprep.subr.mxu0 0.0
    %1071 = vmatpush1.msra.mxu0 0.0
    %1072 = vmatprep.subr.mxu0 0.0
    %1073 = vmatpush1.msra.mxu0 %v95
    %1074 = vmatprep.subr.mxu0 0.0
    %1075 = vmatpush1.msra.mxu0 %v94
    %1076 = vmatprep.subr.mxu0 0.0
    %1077 = vmatpush1.msra.mxu0 %v93
    %1078 = vmatprep.subr.mxu0 0.0
    %1079 = vmatpush1.msra.mxu0 %v92
    %1080 = vmatprep.subr.mxu0 0.0
    %1081 = vmatpush2.msra.mxu0 0.0
    %1082 = vmatprep.subr.mxu0 0.0
    %1083 = vmatpush2.msra.mxu0 0.0
    %1084 = vmatprep.subr.mxu0 0.0
    %1085 = vmatpush2.msra.mxu0 0.0
    %1086 = vmatprep.subr.mxu0 0.0
    %1087 = vmatpush2.msra.mxu0 0.0
    %1088 = vmatprep.subr.mxu0 0.0
    %1089 = vmatpush2.msra.mxu0 0.0
    %1090 = vmatprep.subr.mxu0 0.0
    %1091 = vmatpush2.msra.mxu0 0.0
    %1092 = vmatprep.subr.mxu0 0.0
    %1093 = vmatpush2.msra.mxu0 0.0
    %1094 = vmatprep.subr.mxu0 0.0
    %1095 = vmatpush2.msra.mxu0 0.0
    %1096 = vmatprep.subr.mxu0 0.0
    %1097 = vmatpush2.msra.mxu0 0.0
    %1098 = vmatprep.subr.mxu0 0.0
    %1099 = vmatpush2.msra.mxu0 0.0
    %1100 = vmatprep.subr.mxu0 0.0
    %1101 = vmatpush2.msra.mxu0 0.0
    %1102 = vmatprep.subr.mxu0 0.0
    %1103 = vmatpush2.msra.mxu0 0.0
    %1104 = vmatprep.subr.mxu0 0.0
    %1105 = vmatpush2.msra.mxu0 0.0
    %1106 = vmatprep.subr.mxu0 0.0
    %1107 = vmatpush2.msra.mxu0 0.0
    %1108 = vmatprep.subr.mxu0 0.0
    %1109 = vmatpush2.msra.mxu0 0.0
    %1110 = vmatprep.subr.mxu0 0.0
    %1111 = vmatpush2.msra.mxu0 0.0
    %1112 = vmatprep.mubr.f32.mxu0 0.0
    %1113 = vmatmul.mubr.f32.gmra.mxu0 %v1046
    %v1114 = vpop.f32.mrf.mxu0
    %v1115 = vadd.f32 %v118, %v1114
    %v1116 = vpop.f32.mrf.mxu0
    %1117 = vdwg.mxu0
    %s1118 = scalar_lea.vmem [#allocation5], 6
    %1119 = vst.msk [vmem:[%s1118] sm:$0x3] %vm374, %v1115
    // Predicated region
    $region38: #{tpu_custom_call.1} parent=1 // pred_check
      _
    $region39: #{tpu_custom_call.1} parent=1 // pred_check_branch
      %1121 = sbr.rel (0) target = $region41
    $region40: #{tpu_custom_call.1} parent=1 // pred_region
      %s1123 = ssub.s32 128, 128
      %1124 = vsyncadd [#allocation4], %s1123
      %s1125 = sshll.u32 [#allocation5], 4
      %s1126 = int_to_ptr.vmem [resolvable:$true] %s1125
      %1131 = dma.vmem_to_hbm [thread:$0]  %s1126, 128, %s8, [#allocation4], 32, 32, 2
    $region41: #{tpu_custom_call.1} parent=1 // pred_fallthru
      _
    // Predicated region
    $region42: #{tpu_custom_call.1} parent=1 // pred_check
      _
    $region43: #{tpu_custom_call.1} parent=1 // pred_check_branch
      %1133 = sbr.rel (0) target = $region45
    $region44: #{tpu_custom_call.1} parent=1 // pred_region
      %1134 = dma.done [#allocation4], 128
    $region45: #{tpu_custom_call.1} parent=1 // pred_fallthru
      _
    %1135 = vsyncpa [#allocation3], 1
    %1136 = vsyncpa [#allocation4], 1

</llo_original>
